<compile_context>
chip_gen: v7x
topology: tpu7x:2x2x1
jax: 0.10.0
libtpu: 0.0.40
codegen_flags: <defaults>
</compile_context>

<pallas_src>
import jax
import jax.numpy as jnp
from jax.experimental import pallas as pl
from jax.experimental.pallas import tpu as pltpu

# ---------------- model hyper-parameters (synthetic, deterministic) ----------
D = 16       # forcing (input) features
K = 3        # number of affine flow transforms
HF = 8       # flow conditioner hidden width
HE = 32      # deep-ensemble member hidden width
M = 4        # deep-ensemble members
S = 100      # MC samples for aleatoric uncertainty (forward() uses 100)
SPAD = 104   # padded sample rows (multiple of 8); rows >= S are zero
TN_MAX = 1024

# fused first-layer row layout (all segments sublane-aligned)
ROW_SIG = 0                    # base-distribution sigma head
ROW_MU = 1                     # base-distribution mu head (does not affect outputs)
ROW_F = 8                      # K flow-conditioner first layers
ROW_E = 32                     # M ensemble-member first layers (x part)
ROWS_ALL = ROW_E + M * HE      # 160

F32 = jnp.float32


# ------------------------------ fused kernel ---------------------------------
def _iseflow_kernel(x_ref, eps_ref, w_all_ref, b_all_ref, w2f_ref, b2f_ref,
                    w1z_ref, w2e_ref, b2e_ref, out_ref):
    x = x_ref[...]                                                      # (D, TN)
    tn = x.shape[1]

    # ---- one fused first-layer matmul (context head + K conditioners + M members)
    h_all = jnp.dot(w_all_ref[...], x, preferred_element_type=F32) + b_all_ref[...]   # (160, TN)

    # ---- normalizing-flow conditioners (block-diagonal second layer) ----
    hf = jnp.maximum(h_all[ROW_F:ROW_F + K * HF, :], 0.0)               # (K*HF, TN)
    p = jnp.dot(w2f_ref[...], hf, preferred_element_type=F32) + b2f_ref[...]          # (16, TN)
    shifts = p[0:K, :]                                                  # (K, TN)
    logscales = jnp.tanh(p[8:8 + K, :])                                 # bounded log-scales
    inv_scales = jnp.exp(-logscales)                                    # (K, TN)
    prod_scale = jnp.exp(jnp.sum(logscales, axis=0, keepdims=True))     # (1, TN)

    # ---- get_latent: pull the base point 0 back through the K affine transforms ----
    z = jnp.zeros((1, tn), dtype=F32)
    for k in reversed(range(K)):
        z = (z - shifts[k:k + 1, :]) * inv_scales[k:k + 1, :]

    # ---- deep ensemble on [x, z]; concat fused as h_all(x part) + W1z * z ----
    he = jnp.maximum(h_all[ROW_E:ROW_E + M * HE, :] + w1z_ref[...] * z, 0.0)           # (M*HE, TN)
    oe = jnp.dot(w2e_ref[...], he, preferred_element_type=F32) + b2e_ref[...]          # (M, TN)
    pred = jnp.mean(oe, axis=0, keepdims=True)                                         # (1, TN)
    epi = jnp.sqrt(jnp.sum((oe - pred) ** 2, axis=0, keepdims=True) / (M - 1))         # unbiased

    # ---- aleatoric: std of S MC base samples pushed through the flow.
    # samp = ((mu_b + sig_b*eps)*s0 + t0)*s1 ... is affine in eps per lane, so
    # std(samp) == (sig_b * prod(scales)) * std(eps).  eps rows >= S are zero,
    # so the unmasked sums are exact; reductions go through the idle MXU.
    sig_b = jnp.exp(jnp.tanh(h_all[ROW_SIG:ROW_SIG + 1, :]))                           # (1, TN)
    eps = eps_ref[...]                                                                 # (SPAD, TN)
    ones_row = jnp.ones((1, SPAD), dtype=F32)
    s1 = jnp.dot(ones_row, eps, preferred_element_type=F32)                            # (1, TN)
    s2 = jnp.dot(ones_row, eps * eps, preferred_element_type=F32)                      # (1, TN)
    mean_e = s1 * (1.0 / S)
    var_e = jnp.maximum(s2 - S * mean_e * mean_e, 0.0) / (S - 1)
    alea = (sig_b * prod_scale) * jnp.sqrt(var_e)

    # ---- lane-dense packed output: rows = [prediction, epistemic, aleatoric, total]
    out_ref[...] = jnp.concatenate([pred, epi, alea, alea + epi], axis=0)              # (4, TN)


# ------------------------------ pallas_call wrapper --------------------------
def _rep(arr):
    return pl.BlockSpec(arr.shape, lambda i: (0, 0))


def _iseflow_pallas(xT, eps, fp, tn):
    Dp, Npad = xT.shape
    grid = (Npad // tn,)
    return pl.pallas_call(
        _iseflow_kernel,
        out_shape=jax.ShapeDtypeStruct((4, Npad), F32),
        grid=grid,
        in_specs=[
            pl.BlockSpec((Dp, tn), lambda i: (0, i)),      # x^T tile (batch on lanes)
            pl.BlockSpec((SPAD, tn), lambda i: (0, i)),    # eps tile (samples on sublanes)
            _rep(fp["w_all"]), _rep(fp["b_all"]),
            _rep(fp["W2f"]), _rep(fp["b2f"]),
            _rep(fp["W1z"]), _rep(fp["W2e"]), _rep(fp["b2e"]),
        ],
        out_specs=pl.BlockSpec((4, tn), lambda i: (0, i)),
        compiler_params=pltpu.CompilerParams(dimension_semantics=("parallel",)),
    )(xT, eps, fp["w_all"], fp["b_all"], fp["W2f"], fp["b2f"],
      fp["W1z"], fp["W2e"], fp["b2e"])


def _choose_tile(n):
    """Largest lane tile <= 1024 that still leaves a grid >= 2 (v7x dual-TC)."""
    if n > 2 * TN_MAX:
        return TN_MAX
    return max(128, (((n + 255) // 256) * 256) // 2)


# ------------------------------ ISEFlow forward -------------------------------
@jax.jit
def iseflow_forward(x, fused_params, key):
    """Mirrors ISEFlow.forward:
         z = NF.get_latent(x); X_latent = concat([x, z], 1)
         prediction, epistemic = DeepEnsemble(X_latent)
         aleatoric = NF.aleatoric(x, 100)
         uncertainties = {total, epistemic, aleatoric}
    """
    N = x.shape[0]
    tn = _choose_tile(N)
    npad = ((N + tn - 1) // tn) * tn

    xT = jnp.pad(x.T, ((0, 0), (0, npad - N)))                      # (D, Npad)
    eps = jax.random.normal(key, (S, N), F32)                       # MC base noise
    eps = jnp.pad(eps, ((0, SPAD - S), (0, npad - N)))              # (SPAD, Npad)

    out = _iseflow_pallas(xT, eps, fused_params, tn)[:, :N]         # (4, N)
    prediction = out[0][:, None]
    epistemic = out[1][:, None]
    aleatoric = out[2][:, None]
    total = out[3][:, None]
    return prediction, dict(total=total, epistemic=epistemic, aleatoric=aleatoric)


# ------------------------- deterministic parameters ---------------------------
def make_params(key):
    ks = jax.random.split(key, 10)
    nf = {
        "wb": 0.1 * jax.random.normal(ks[0], (D, 2), F32),    # col 0 = mu, col 1 = log-sigma pre
        "bb": 0.1 * jax.random.normal(ks[1], (1, 2), F32),
        "w1": 0.1 * jax.random.normal(ks[2], (K, D, HF), F32),
        "b1": 0.1 * jax.random.normal(ks[3], (K, 1, HF), F32),
        "w2": 0.1 * jax.random.normal(ks[4], (K, HF, 2), F32),
        "b2": 0.1 * jax.random.normal(ks[5], (K, 1, 2), F32),
    }
    de = {
        "w1": 0.1 * jax.random.normal(ks[6], (M, D + 1, HE), F32),
        "b1": 0.1 * jax.random.normal(ks[7], (M, 1, HE), F32),
        "w2": 0.1 * jax.random.normal(ks[8], (M, HE, 1), F32),
        "b2": 0.1 * jax.random.normal(ks[9], (M, 1, 1), F32),
    }
    return nf, de


def fuse_params(nf, de):
    """Host-side layout plumbing: stack per-head weights into the fused kernel layout."""
    # Fused first layer acting on x (sublane-aligned segments).
    w_all = jnp.zeros((ROWS_ALL, D), F32)
    b_all = jnp.zeros((ROWS_ALL, 1), F32)
    w_all = w_all.at[ROW_SIG].set(nf["wb"][:, 1])
    w_all = w_all.at[ROW_MU].set(nf["wb"][:, 0])
    b_all = b_all.at[ROW_SIG, 0].set(nf["bb"][0, 1])
    b_all = b_all.at[ROW_MU, 0].set(nf["bb"][0, 0])

    W1f = jnp.transpose(nf["w1"], (0, 2, 1)).reshape(K * HF, D)
    b1f = nf["b1"].reshape(K * HF, 1)
    w_all = w_all.at[ROW_F:ROW_F + K * HF].set(W1f)
    b_all = b_all.at[ROW_F:ROW_F + K * HF].set(b1f)

    W1e = jnp.transpose(de["w1"][:, :D, :], (0, 2, 1)).reshape(M * HE, D)
    b1e = de["b1"].reshape(M * HE, 1)
    w_all = w_all.at[ROW_E:ROW_E + M * HE].set(W1e)
    b_all = b_all.at[ROW_E:ROW_E + M * HE].set(b1e)

    W1z = jnp.transpose(de["w1"][:, D:, :], (0, 2, 1)).reshape(M * HE, 1)

    # Flow conditioner second layer: block-diagonal; shifts rows [0:K), log-scales rows [8:8+K).
    W2f = jnp.zeros((16, K * HF), F32)
    b2f = jnp.zeros((16, 1), F32)
    for k in range(K):
        W2f = W2f.at[k, k * HF:(k + 1) * HF].set(nf["w2"][k, :, 0])
        W2f = W2f.at[8 + k, k * HF:(k + 1) * HF].set(nf["w2"][k, :, 1])
        b2f = b2f.at[k, 0].set(nf["b2"][k, 0, 0])
        b2f = b2f.at[8 + k, 0].set(nf["b2"][k, 0, 1])

    # Deep ensemble second layer: block-diagonal heads.
    W2e = jnp.zeros((M, M * HE), F32)
    for m in range(M):
        W2e = W2e.at[m, m * HE:(m + 1) * HE].set(de["w2"][m, :, 0])
    b2e = de["b2"].reshape(M, 1)

    return {"w_all": w_all, "b_all": b_all, "W2f": W2f, "b2f": b2f,
            "W1z": W1z, "W2e": W2e, "b2e": b2e}


# ----------------------------- pure-JAX reference -----------------------------
def reference_forward(x, nf, de, eps):
    ctx = x @ nf["wb"] + nf["bb"]                                   # (N, 2)
    mu_b, sig_b = ctx[:, 0], jnp.exp(jnp.tanh(ctx[:, 1]))
    shifts, logscales = [], []
    for k in range(K):
        h = jnp.maximum(x @ nf["w1"][k] + nf["b1"][k], 0.0)
        pk = h @ nf["w2"][k] + nf["b2"][k]
        shifts.append(pk[:, 0])
        logscales.append(jnp.tanh(pk[:, 1]))
    z = jnp.zeros((x.shape[0],), F32)
    for k in reversed(range(K)):
        z = (z - shifts[k]) * jnp.exp(-logscales[k])
    xl = jnp.concatenate([x, z[:, None]], axis=1)
    outs = []
    for m in range(M):
        h = jnp.maximum(xl @ de["w1"][m] + de["b1"][m], 0.0)
        outs.append((h @ de["w2"][m] + de["b2"][m])[:, 0])
    oe = jnp.stack(outs, 0)
    pred = oe.mean(0)
    epi = jnp.sqrt(((oe - pred) ** 2).sum(0) / (M - 1))
    samp = mu_b[None] + sig_b[None] * eps                           # (S, N) MC push-forward
    for k in range(K):
        samp = samp * jnp.exp(logscales[k])[None] + shifts[k][None]
    alea = jnp.std(samp, axis=0, ddof=1)
    return pred, epi, alea


# TODO(synk): ISEFlow.fit() training loops, predict()'s pickled output-scaler
# inverse_transform, and checkpoint save/load have no in-kernel equivalent and
# are omitted.

if __name__ == "__main__":
    key = jax.random.PRNGKey(0)
    pkey, xkey, ekey = jax.random.split(key, 3)
    nf_params, de_params = make_params(pkey)
    fp = fuse_params(nf_params, de_params)

    N = 1024                                  # TN=512, grid=2 (dual-TC friendly)
    x = jax.random.normal(xkey, (N, D), F32)

    prediction, uncertainties = iseflow_forward(x, fp, ekey)
    jax.block_until_ready(prediction)
    jax.block_until_ready(uncertainties["total"])

    # shape / sanity checks
    assert prediction.shape == (N, 1)
    assert uncertainties["epistemic"].shape == (N, 1)
    assert uncertainties["aleatoric"].shape == (N, 1)
    assert bool(jnp.all(jnp.isfinite(prediction)))
    assert bool(jnp.all(jnp.isfinite(uncertainties["total"])))
    assert bool(jnp.all(uncertainties["aleatoric"] >= 0))
    assert bool(jnp.all(uncertainties["epistemic"] >= 0))

    # numerical check against a pure-JAX reference using the same MC noise
    eps_ref = jax.random.normal(ekey, (S, N), F32)
    pred_r, epi_r, alea_r = reference_forward(x, nf_params, de_params, eps_ref)
    assert bool(jnp.allclose(prediction[:, 0], pred_r, rtol=1e-2, atol=1e-2))
    assert bool(jnp.allclose(uncertainties["epistemic"][:, 0], epi_r, rtol=1e-2, atol=1e-2))
    assert bool(jnp.allclose(uncertainties["aleatoric"][:, 0], alea_r, rtol=1e-2, atol=1e-2))

    print("KERNEL_OK")
</pallas_src>

<mosaic_0001>
module attributes {stable_mosaic.version = 11 : i64} {
  func.func @_iseflow_kernel(%arg0: i32, %arg1: memref<16x512xf32, #tpu.memory_space<vmem>>, %arg2: memref<104x512xf32, #tpu.memory_space<vmem>>, %arg3: memref<160x16xf32, #tpu.memory_space<vmem>>, %arg4: memref<160x1xf32, #tpu.memory_space<vmem>>, %arg5: memref<16x24xf32, #tpu.memory_space<vmem>>, %arg6: memref<16x1xf32, #tpu.memory_space<vmem>>, %arg7: memref<128x1xf32, #tpu.memory_space<vmem>>, %arg8: memref<4x128xf32, #tpu.memory_space<vmem>>, %arg9: memref<4x1xf32, #tpu.memory_space<vmem>>, %arg10: memref<4x512xf32, #tpu.memory_space<vmem>>) attributes {dimension_semantics = [#tpu.dimension_semantics<parallel>], iteration_bounds = array<i64: 2>, scalar_prefetch = 0 : i64, scratch_operands = 0 : i64, tpu.core_type = #tpu.core_type<tc>, window_params = [{transform_indices = @transform_0, window_bounds = array<i64: 16, 512>}, {transform_indices = @transform_1, window_bounds = array<i64: 104, 512>}, {pipeline_mode = #tpu.pipeline_mode<synchronous>, transform_indices = @transform_2, window_bounds = array<i64: 160, 16>}, {pipeline_mode = #tpu.pipeline_mode<synchronous>, transform_indices = @transform_3, window_bounds = array<i64: 160, 1>}, {pipeline_mode = #tpu.pipeline_mode<synchronous>, transform_indices = @transform_4, window_bounds = array<i64: 16, 24>}, {pipeline_mode = #tpu.pipeline_mode<synchronous>, transform_indices = @transform_5, window_bounds = array<i64: 16, 1>}, {pipeline_mode = #tpu.pipeline_mode<synchronous>, transform_indices = @transform_6, window_bounds = array<i64: 128, 1>}, {pipeline_mode = #tpu.pipeline_mode<synchronous>, transform_indices = @transform_7, window_bounds = array<i64: 4, 128>}, {pipeline_mode = #tpu.pipeline_mode<synchronous>, transform_indices = @transform_8, window_bounds = array<i64: 4, 1>}, {transform_indices = @transform_9, window_bounds = array<i64: 4, 512>}]} {
    %c0 = arith.constant 0 : index
    %c0_0 = arith.constant 0 : index
    %0 = vector.load %arg1[%c0, %c0_0] : memref<16x512xf32, #tpu.memory_space<vmem>>, vector<16x512xf32>
    %c0_1 = arith.constant 0 : index
    %c0_2 = arith.constant 0 : index
    %1 = vector.load %arg3[%c0_1, %c0_2] : memref<160x16xf32, #tpu.memory_space<vmem>>, vector<160x16xf32>
    %cst = arith.constant dense<0.000000e+00> : vector<160x512xf32>
    %2 = tpu.matmul %1, %0, %cst {dimension_numbers = #tpu.dot_dimension_numbers<[1], [0], [0], [1], [0, 0, 1, 1], [], []>} : vector<160x16xf32>, vector<16x512xf32>, vector<160x512xf32> -> vector<160x512xf32>
    %c0_3 = arith.constant 0 : index
    %c0_4 = arith.constant 0 : index
    %3 = vector.load %arg4[%c0_3, %c0_4] : memref<160x1xf32, #tpu.memory_space<vmem>>, vector<160x1xf32>
    %4 = vector.broadcast %3 : vector<160x1xf32> to vector<160x512xf32>
    %5 = arith.addf %2, %4 : vector<160x512xf32>
    %6 = vector.extract_strided_slice %5 {offsets = [8, 0], sizes = [24, 512], strides = [1, 1]} : vector<160x512xf32> to vector<24x512xf32>
    %cst_5 = arith.constant 0.000000e+00 : f32
    %7 = vector.broadcast %cst_5 : f32 to vector<24x512xf32>
    %8 = arith.maximumf %6, %7 : vector<24x512xf32>
    %c0_6 = arith.constant 0 : index
    %c0_7 = arith.constant 0 : index
    %9 = vector.load %arg5[%c0_6, %c0_7] : memref<16x24xf32, #tpu.memory_space<vmem>>, vector<16x24xf32>
    %cst_8 = arith.constant dense<0.000000e+00> : vector<16x512xf32>
    %10 = tpu.matmul %9, %8, %cst_8 {dimension_numbers = #tpu.dot_dimension_numbers<[1], [0], [0], [1], [0, 0, 1, 1], [], []>} : vector<16x24xf32>, vector<24x512xf32>, vector<16x512xf32> -> vector<16x512xf32>
    %c0_9 = arith.constant 0 : index
    %c0_10 = arith.constant 0 : index
    %11 = vector.load %arg6[%c0_9, %c0_10] : memref<16x1xf32, #tpu.memory_space<vmem>>, vector<16x1xf32>
    %12 = vector.broadcast %11 : vector<16x1xf32> to vector<16x512xf32>
    %13 = arith.addf %10, %12 : vector<16x512xf32>
    %14 = vector.extract_strided_slice %13 {offsets = [0, 0], sizes = [3, 512], strides = [1, 1]} : vector<16x512xf32> to vector<3x512xf32>
    %15 = vector.extract_strided_slice %13 {offsets = [8, 0], sizes = [3, 512], strides = [1, 1]} : vector<16x512xf32> to vector<3x512xf32>
    %16 = math.tanh %15 : vector<3x512xf32>
    %cst_11 = arith.constant 0.000000e+00 : f32
    %17 = vector.broadcast %cst_11 : f32 to vector<3x512xf32>
    %18 = arith.subf %17, %16 : vector<3x512xf32>
    %19 = math.exp %18 : vector<3x512xf32>
    %cst_12 = arith.constant dense<0.000000e+00> : vector<512xf32>
    %20 = vector.multi_reduction <add>, %16, %cst_12 [0] : vector<3x512xf32> to vector<512xf32>
    %21 = vector.shape_cast %20 : vector<512xf32> to vector<1x512xf32>
    %22 = math.exp %21 : vector<1x512xf32>
    %cst_13 = arith.constant 0.000000e+00 : f32
    %23 = vector.broadcast %cst_13 : f32 to vector<1x512xf32>
    %24 = vector.extract_strided_slice %14 {offsets = [2, 0], sizes = [1, 512], strides = [1, 1]} : vector<3x512xf32> to vector<1x512xf32>
    %25 = arith.subf %23, %24 : vector<1x512xf32>
    %26 = vector.extract_strided_slice %19 {offsets = [2, 0], sizes = [1, 512], strides = [1, 1]} : vector<3x512xf32> to vector<1x512xf32>
    %27 = arith.mulf %25, %26 : vector<1x512xf32>
    %28 = vector.extract_strided_slice %14 {offsets = [1, 0], sizes = [1, 512], strides = [1, 1]} : vector<3x512xf32> to vector<1x512xf32>
    %29 = arith.subf %27, %28 : vector<1x512xf32>
    %30 = vector.extract_strided_slice %19 {offsets = [1, 0], sizes = [1, 512], strides = [1, 1]} : vector<3x512xf32> to vector<1x512xf32>
    %31 = arith.mulf %29, %30 : vector<1x512xf32>
    %32 = vector.extract_strided_slice %14 {offsets = [0, 0], sizes = [1, 512], strides = [1, 1]} : vector<3x512xf32> to vector<1x512xf32>
    %33 = arith.subf %31, %32 : vector<1x512xf32>
    %34 = vector.extract_strided_slice %19 {offsets = [0, 0], sizes = [1, 512], strides = [1, 1]} : vector<3x512xf32> to vector<1x512xf32>
    %35 = arith.mulf %33, %34 : vector<1x512xf32>
    %36 = vector.extract_strided_slice %5 {offsets = [32, 0], sizes = [128, 512], strides = [1, 1]} : vector<160x512xf32> to vector<128x512xf32>
    %c0_14 = arith.constant 0 : index
    %c0_15 = arith.constant 0 : index
    %37 = vector.load %arg7[%c0_14, %c0_15] : memref<128x1xf32, #tpu.memory_space<vmem>>, vector<128x1xf32>
    %38 = vector.broadcast %37 : vector<128x1xf32> to vector<128x512xf32>
    %39 = vector.broadcast %35 : vector<1x512xf32> to vector<128x512xf32>
    %40 = arith.mulf %38, %39 : vector<128x512xf32>
    %41 = arith.addf %36, %40 : vector<128x512xf32>
    %cst_16 = arith.constant 0.000000e+00 : f32
    %42 = vector.broadcast %cst_16 : f32 to vector<128x512xf32>
    %43 = arith.maximumf %41, %42 : vector<128x512xf32>
    %c0_17 = arith.constant 0 : index
    %c0_18 = arith.constant 0 : index
    %44 = vector.load %arg8[%c0_17, %c0_18] : memref<4x128xf32, #tpu.memory_space<vmem>>, vector<4x128xf32>
    %cst_19 = arith.constant dense<0.000000e+00> : vector<4x512xf32>
    %45 = tpu.matmul %44, %43, %cst_19 {dimension_numbers = #tpu.dot_dimension_numbers<[1], [0], [0], [1], [0, 0, 1, 1], [], []>} : vector<4x128xf32>, vector<128x512xf32>, vector<4x512xf32> -> vector<4x512xf32>
    %c0_20 = arith.constant 0 : index
    %c0_21 = arith.constant 0 : index
    %46 = vector.load %arg9[%c0_20, %c0_21] : memref<4x1xf32, #tpu.memory_space<vmem>>, vector<4x1xf32>
    %47 = vector.broadcast %46 : vector<4x1xf32> to vector<4x512xf32>
    %48 = arith.addf %45, %47 : vector<4x512xf32>
    %cst_22 = arith.constant dense<0.000000e+00> : vector<512xf32>
    %49 = vector.multi_reduction <add>, %48, %cst_22 [0] : vector<4x512xf32> to vector<512xf32>
    %50 = vector.shape_cast %49 : vector<512xf32> to vector<1x512xf32>
    %cst_23 = arith.constant 4.000000e+00 : f32
    %51 = vector.broadcast %cst_23 : f32 to vector<1x512xf32>
    %52 = arith.divf %50, %51 : vector<1x512xf32>
    %53 = vector.broadcast %52 : vector<1x512xf32> to vector<4x512xf32>
    %54 = arith.subf %48, %53 : vector<4x512xf32>
    %55 = arith.mulf %54, %54 : vector<4x512xf32>
    %cst_24 = arith.constant dense<0.000000e+00> : vector<512xf32>
    %56 = vector.multi_reduction <add>, %55, %cst_24 [0] : vector<4x512xf32> to vector<512xf32>
    %57 = vector.shape_cast %56 : vector<512xf32> to vector<1x512xf32>
    %cst_25 = arith.constant 3.000000e+00 : f32
    %58 = vector.broadcast %cst_25 : f32 to vector<1x512xf32>
    %59 = arith.divf %57, %58 : vector<1x512xf32>
    %60 = math.sqrt %59 : vector<1x512xf32>
    %61 = vector.extract_strided_slice %5 {offsets = [0, 0], sizes = [1, 512], strides = [1, 1]} : vector<160x512xf32> to vector<1x512xf32>
    %62 = math.tanh %61 : vector<1x512xf32>
    %63 = math.exp %62 : vector<1x512xf32>
    %c0_26 = arith.constant 0 : index
    %c0_27 = arith.constant 0 : index
    %64 = vector.load %arg2[%c0_26, %c0_27] : memref<104x512xf32, #tpu.memory_space<vmem>>, vector<104x512xf32>
    %cst_28 = arith.constant 1.000000e+00 : f32
    %65 = vector.broadcast %cst_28 : f32 to vector<1x104xf32>
    %cst_29 = arith.constant dense<0.000000e+00> : vector<1x512xf32>
    %66 = tpu.matmul %65, %64, %cst_29 {dimension_numbers = #tpu.dot_dimension_numbers<[1], [0], [0], [1], [0, 0, 1, 1], [], []>} : vector<1x104xf32>, vector<104x512xf32>, vector<1x512xf32> -> vector<1x512xf32>
    %67 = arith.mulf %64, %64 : vector<104x512xf32>
    %cst_30 = arith.constant dense<0.000000e+00> : vector<1x512xf32>
    %68 = tpu.matmul %65, %67, %cst_30 {dimension_numbers = #tpu.dot_dimension_numbers<[1], [0], [0], [1], [0, 0, 1, 1], [], []>} : vector<1x104xf32>, vector<104x512xf32>, vector<1x512xf32> -> vector<1x512xf32>
    %cst_31 = arith.constant 0.00999999977 : f32
    %69 = vector.broadcast %cst_31 : f32 to vector<1x512xf32>
    %70 = arith.mulf %66, %69 : vector<1x512xf32>
    %cst_32 = arith.constant 1.000000e+02 : f32
    %71 = vector.broadcast %cst_32 : f32 to vector<1x512xf32>
    %72 = arith.mulf %71, %70 : vector<1x512xf32>
    %73 = arith.mulf %72, %70 : vector<1x512xf32>
    %74 = arith.subf %68, %73 : vector<1x512xf32>
    %cst_33 = arith.constant 0.000000e+00 : f32
    %75 = vector.broadcast %cst_33 : f32 to vector<1x512xf32>
    %76 = arith.maximumf %74, %75 : vector<1x512xf32>
    %cst_34 = arith.constant 9.900000e+01 : f32
    %77 = vector.broadcast %cst_34 : f32 to vector<1x512xf32>
    %78 = arith.divf %76, %77 : vector<1x512xf32>
    %79 = arith.mulf %63, %22 : vector<1x512xf32>
    %80 = math.sqrt %78 : vector<1x512xf32>
    %81 = arith.mulf %79, %80 : vector<1x512xf32>
    %82 = arith.addf %81, %60 : vector<1x512xf32>
    %83 = tpu.concatenate %52, %60, %81, %82 in 0 : vector<1x512xf32>, vector<1x512xf32>, vector<1x512xf32>, vector<1x512xf32> -> vector<4x512xf32>
    %c0_35 = arith.constant 0 : index
    %c0_36 = arith.constant 0 : index
    %84 = vector.load %arg10[%c0_35, %c0_36] : memref<4x512xf32, #tpu.memory_space<vmem>>, vector<4x512xf32>
    tpu.vector_store %arg10[%c0_35, %c0_36], %83 {strides = array<i32>} : memref<4x512xf32, #tpu.memory_space<vmem>>, vector<4x512xf32>,
    return
  }
  func.func @transform_0(%arg0: i32) -> (i32, i32) {
    %c0_i32 = arith.constant 0 : i32
    %c0_i32_0 = arith.constant 0 : i32
    return %c0_i32, %arg0 : i32, i32
  }
  func.func @transform_1(%arg0: i32) -> (i32, i32) {
    %c0_i32 = arith.constant 0 : i32
    %c0_i32_0 = arith.constant 0 : i32
    return %c0_i32, %arg0 : i32, i32
  }
  func.func @transform_2(%arg0: i32) -> (i32, i32) {
    %c0_i32 = arith.constant 0 : i32
    %c0_i32_0 = arith.constant 0 : i32
    %c0_i32_1 = arith.constant 0 : i32
    return %c0_i32, %c0_i32_0 : i32, i32
  }
  func.func @transform_3(%arg0: i32) -> (i32, i32) {
    %c0_i32 = arith.constant 0 : i32
    %c0_i32_0 = arith.constant 0 : i32
    %c0_i32_1 = arith.constant 0 : i32
    return %c0_i32, %c0_i32_0 : i32, i32
  }
  func.func @transform_4(%arg0: i32) -> (i32, i32) {
    %c0_i32 = arith.constant 0 : i32
    %c0_i32_0 = arith.constant 0 : i32
    %c0_i32_1 = arith.constant 0 : i32
    return %c0_i32, %c0_i32_0 : i32, i32
  }
  func.func @transform_5(%arg0: i32) -> (i32, i32) {
    %c0_i32 = arith.constant 0 : i32
    %c0_i32_0 = arith.constant 0 : i32
    %c0_i32_1 = arith.constant 0 : i32
    return %c0_i32, %c0_i32_0 : i32, i32
  }
  func.func @transform_6(%arg0: i32) -> (i32, i32) {
    %c0_i32 = arith.constant 0 : i32
    %c0_i32_0 = arith.constant 0 : i32
    %c0_i32_1 = arith.constant 0 : i32
    return %c0_i32, %c0_i32_0 : i32, i32
  }
  func.func @transform_7(%arg0: i32) -> (i32, i32) {
    %c0_i32 = arith.constant 0 : i32
    %c0_i32_0 = arith.constant 0 : i32
    %c0_i32_1 = arith.constant 0 : i32
    return %c0_i32, %c0_i32_0 : i32, i32
  }
  func.func @transform_8(%arg0: i32) -> (i32, i32) {
    %c0_i32 = arith.constant 0 : i32
    %c0_i32_0 = arith.constant 0 : i32
    %c0_i32_1 = arith.constant 0 : i32
    return %c0_i32, %c0_i32_0 : i32, i32
  }
  func.func @transform_9(%arg0: i32) -> (i32, i32) {
    %c0_i32 = arith.constant 0 : i32
    %c0_i32_0 = arith.constant 0 : i32
    return %c0_i32, %arg0 : i32, i32
  }
}

</mosaic_0001>

<llo_original>
// kernel: iseflow_forward.1
$region0: #{iseflow_forward.1}
  #allocation0 [shape = 'u32[]', space=smem, size = 0x4, offset = 0x4, fixed_abs, tag = 'smem constant byte address 0x4 - core index']
  #allocation1 [shape = 'u32[144,128]{1,0:T(1,128)}', space=vmem, size = 0x12000, scoped, tag = 'internal scratch']
  %s0 = inlined_call_operand.vmem [shape: f32[16,1024], index: 0, kind: input, shape index: {}]
  %s1 = inlined_call_operand.vmem [shape: f32[104,1024], index: 1, kind: input, shape index: {}]
  %s2 = inlined_call_operand.vmem [shape: f32[160,16], index: 2, kind: input, shape index: {}]
  %s3 = inlined_call_operand.vmem [shape: f32[160,1], index: 3, kind: input, shape index: {}]
  %s4 = inlined_call_operand.vmem [shape: f32[16,24], index: 4, kind: input, shape index: {}]
  %s5 = inlined_call_operand.vmem [shape: f32[16,1], index: 5, kind: input, shape index: {}]
  %s6 = inlined_call_operand.vmem [shape: f32[128,1], index: 6, kind: input, shape index: {}]
  %s7 = inlined_call_operand.vmem [shape: f32[4,128], index: 7, kind: input, shape index: {}]
  %s8 = inlined_call_operand.vmem [shape: f32[4,1], index: 8, kind: input, shape index: {}]
  %s9 = inlined_call_operand.vmem [shape: f32[4,1024], index: 9, kind: output, shape index: {}]
  %s10 = sld [smem:[#allocation0]]
  $region115: #{iseflow_forward.1} parent=0
    _
  %s12 = ssub.s32 1, %s10
  %s13 = scalar_select 0, %s12, %s10
  $region1: #{iseflow_forward.1} parent=0
    #allocation2 [shape = 'u8[65536]{0}', space=vmem, size = 0x10000, scoped, tag = 'input window, operand 0']
    #allocation3 [shape = 'u8[425984]{0}', space=vmem, size = 0x68000, scoped, tag = 'input window, operand 1']
    loop: start=0, step=1, limit=4
    $region2: #{iseflow_forward.1} parent=1 // loop_pre_header
      _
    $region3: #{iseflow_forward.1} parent=1 // loop_header
      %s15 = sphi 0, %s19
      %p16 = scmp.ge.s32.totalorder %s15, 4
      %s25 = sphi 0, %s27
      %s28 = sphi 0, %s25
      %s29 = sphi 0, %s28
      %s45 = sphi 0, %s29
      %s51 = sphi 0, %s53
      %s54 = sphi 0, %s51
      %s55 = sphi 0, %s54
      %s71 = sphi 0, %s55
      %s75 = sphi 0, %s75
      %s77 = sphi 0, %s75
      %s78 = sphi 0, %s77
      %s92 = sphi 0, %s78
      %s96 = sphi 0, %s96
      %s98 = sphi 0, %s96
      %s99 = sphi 0, %s98
      %s113 = sphi 0, %s99
      %s117 = sphi 0, %s117
      %s119 = sphi 0, %s117
      %s120 = sphi 0, %s119
      %s134 = sphi 0, %s120
      %s138 = sphi 0, %s138
      %s140 = sphi 0, %s138
      %s141 = sphi 0, %s140
      %s155 = sphi 0, %s141
      %s159 = sphi 0, %s159
      %s161 = sphi 0, %s159
      %s162 = sphi 0, %s161
      %s176 = sphi 0, %s162
      %s180 = sphi 0, %s180
      %s182 = sphi 0, %s180
      %s183 = sphi 0, %s182
      %s197 = sphi 0, %s183
      %s201 = sphi 0, %s201
      %s203 = sphi 0, %s201
      %s204 = sphi 0, %s203
      %s218 = sphi 0, %s204
      %s224 = sphi 0, %s226
      %s227 = sphi 0, %s224
      %s228 = sphi 0, %s227
      %s244 = sphi 0, %s228
    $region4: #{iseflow_forward.1} parent=1 // loop_header_branch
      %18 = sbr.rel (%p16) target = $region8
    $region5: #{iseflow_forward.1} parent=1 // loop_body
      %s20 = ssub.s32 %s15, 1
      %s21 = ssub.s32 %s15, 2
      %s22 = sadd.s32 %s15, 1
      %s23 = ssub.s32 %s15, %s22
      %p24 = scmp.eq.s32.totalorder %s23, 0
      %s26 = sadd.s32 %s25, 1
      %s27 = scalar_select %p24, %s25, %s26
      %p30 = pneg %p24
      %p31 = scmp.eq.s32.totalorder %s15, 1
      %p32 = por %p30, %p31
      %p33 = scmp.ne.s32.totalorder %s25, %s28
      %p34 = scmp.eq.s32.totalorder %s15, 0
      %p35 = por %p33, %p34
      %p36 = scmp.ne.s32.totalorder %s25, %s28
      %p37 = scmp.eq.s32.totalorder %s20, 1
      %p38 = por %p36, %p37
      %p39 = scmp.ne.s32.totalorder %s28, %s29
      %p40 = scmp.eq.s32.totalorder %s20, 0
      %p41 = por %p39, %p40
      %p42 = scmp.ne.s32.totalorder %s28, %s29
      %p43 = scmp.eq.s32.totalorder %s21, 1
      %p44 = por %p42, %p43
      %p46 = scmp.ne.s32.totalorder %s29, %s45
      %p47 = scmp.eq.s32.totalorder %s21, 0
      %p48 = por %p46, %p47
      %s49 = ssub.s32 %s15, %s22
      %p50 = scmp.eq.s32.totalorder %s49, 0
      %s52 = sadd.s32 %s51, 1
      %s53 = scalar_select %p50, %s51, %s52
      %p56 = pneg %p50
      %p57 = scmp.eq.s32.totalorder %s15, 1
      %p58 = por %p56, %p57
      %p59 = scmp.ne.s32.totalorder %s51, %s54
      %p60 = scmp.eq.s32.totalorder %s15, 0
      %p61 = por %p59, %p60
      %p62 = scmp.ne.s32.totalorder %s51, %s54
      %p63 = scmp.eq.s32.totalorder %s20, 1
      %p64 = por %p62, %p63
      %p65 = scmp.ne.s32.totalorder %s54, %s55
      %p66 = scmp.eq.s32.totalorder %s20, 0
      %p67 = por %p65, %p66
      %p68 = scmp.ne.s32.totalorder %s54, %s55
      %p69 = scmp.eq.s32.totalorder %s21, 1
      %p70 = por %p68, %p69
      %p72 = scmp.ne.s32.totalorder %s55, %s71
      %p73 = scmp.eq.s32.totalorder %s21, 0
      %p74 = por %p72, %p73
      %s76 = sadd.s32 %s75, 1
      %p79 = scmp.eq.s32.totalorder %s15, 1
      %p80 = scmp.ne.s32.totalorder %s75, %s77
      %p81 = scmp.eq.s32.totalorder %s15, 0
      %p82 = por %p80, %p81
      %p83 = scmp.ne.s32.totalorder %s75, %s77
      %p84 = scmp.eq.s32.totalorder %s20, 1
      %p85 = por %p83, %p84
      %p86 = scmp.ne.s32.totalorder %s77, %s78
      %p87 = scmp.eq.s32.totalorder %s20, 0
      %p88 = por %p86, %p87
      %p89 = scmp.ne.s32.totalorder %s77, %s78
      %p90 = scmp.eq.s32.totalorder %s21, 1
      %p91 = por %p89, %p90
      %p93 = scmp.ne.s32.totalorder %s78, %s92
      %p94 = scmp.eq.s32.totalorder %s21, 0
      %p95 = por %p93, %p94
      %s97 = sadd.s32 %s96, 1
      %p100 = scmp.eq.s32.totalorder %s15, 1
      %p101 = scmp.ne.s32.totalorder %s96, %s98
      %p102 = scmp.eq.s32.totalorder %s15, 0
      %p103 = por %p101, %p102
      %p104 = scmp.ne.s32.totalorder %s96, %s98
      %p105 = scmp.eq.s32.totalorder %s20, 1
      %p106 = por %p104, %p105
      %p107 = scmp.ne.s32.totalorder %s98, %s99
      %p108 = scmp.eq.s32.totalorder %s20, 0
      %p109 = por %p107, %p108
      %p110 = scmp.ne.s32.totalorder %s98, %s99
      %p111 = scmp.eq.s32.totalorder %s21, 1
      %p112 = por %p110, %p111
      %p114 = scmp.ne.s32.totalorder %s99, %s113
      %p115 = scmp.eq.s32.totalorder %s21, 0
      %p116 = por %p114, %p115
      %s118 = sadd.s32 %s117, 1
      %p121 = scmp.eq.s32.totalorder %s15, 1
      %p122 = scmp.ne.s32.totalorder %s117, %s119
      %p123 = scmp.eq.s32.totalorder %s15, 0
      %p124 = por %p122, %p123
      %p125 = scmp.ne.s32.totalorder %s117, %s119
      %p126 = scmp.eq.s32.totalorder %s20, 1
      %p127 = por %p125, %p126
      %p128 = scmp.ne.s32.totalorder %s119, %s120
      %p129 = scmp.eq.s32.totalorder %s20, 0
      %p130 = por %p128, %p129
      %p131 = scmp.ne.s32.totalorder %s119, %s120
      %p132 = scmp.eq.s32.totalorder %s21, 1
      %p133 = por %p131, %p132
      %p135 = scmp.ne.s32.totalorder %s120, %s134
      %p136 = scmp.eq.s32.totalorder %s21, 0
      %p137 = por %p135, %p136
      %s139 = sadd.s32 %s138, 1
      %p142 = scmp.eq.s32.totalorder %s15, 1
      %p143 = scmp.ne.s32.totalorder %s138, %s140
      %p144 = scmp.eq.s32.totalorder %s15, 0
      %p145 = por %p143, %p144
      %p146 = scmp.ne.s32.totalorder %s138, %s140
      %p147 = scmp.eq.s32.totalorder %s20, 1
      %p148 = por %p146, %p147
      %p149 = scmp.ne.s32.totalorder %s140, %s141
      %p150 = scmp.eq.s32.totalorder %s20, 0
      %p151 = por %p149, %p150
      %p152 = scmp.ne.s32.totalorder %s140, %s141
      %p153 = scmp.eq.s32.totalorder %s21, 1
      %p154 = por %p152, %p153
      %p156 = scmp.ne.s32.totalorder %s141, %s155
      %p157 = scmp.eq.s32.totalorder %s21, 0
      %p158 = por %p156, %p157
      %s160 = sadd.s32 %s159, 1
      %p163 = scmp.eq.s32.totalorder %s15, 1
      %p164 = scmp.ne.s32.totalorder %s159, %s161
      %p165 = scmp.eq.s32.totalorder %s15, 0
      %p166 = por %p164, %p165
      %p167 = scmp.ne.s32.totalorder %s159, %s161
      %p168 = scmp.eq.s32.totalorder %s20, 1
      %p169 = por %p167, %p168
      %p170 = scmp.ne.s32.totalorder %s161, %s162
      %p171 = scmp.eq.s32.totalorder %s20, 0
      %p172 = por %p170, %p171
      %p173 = scmp.ne.s32.totalorder %s161, %s162
      %p174 = scmp.eq.s32.totalorder %s21, 1
      %p175 = por %p173, %p174
      %p177 = scmp.ne.s32.totalorder %s162, %s176
      %p178 = scmp.eq.s32.totalorder %s21, 0
      %p179 = por %p177, %p178
      %s181 = sadd.s32 %s180, 1
      %p184 = scmp.eq.s32.totalorder %s15, 1
      %p185 = scmp.ne.s32.totalorder %s180, %s182
      %p186 = scmp.eq.s32.totalorder %s15, 0
      %p187 = por %p185, %p186
      %p188 = scmp.ne.s32.totalorder %s180, %s182
      %p189 = scmp.eq.s32.totalorder %s20, 1
      %p190 = por %p188, %p189
      %p191 = scmp.ne.s32.totalorder %s182, %s183
      %p192 = scmp.eq.s32.totalorder %s20, 0
      %p193 = por %p191, %p192
      %p194 = scmp.ne.s32.totalorder %s182, %s183
      %p195 = scmp.eq.s32.totalorder %s21, 1
      %p196 = por %p194, %p195
      %p198 = scmp.ne.s32.totalorder %s183, %s197
      %p199 = scmp.eq.s32.totalorder %s21, 0
      %p200 = por %p198, %p199
      %s202 = sadd.s32 %s201, 1
      %p205 = scmp.eq.s32.totalorder %s15, 1
      %p206 = scmp.ne.s32.totalorder %s201, %s203
      %p207 = scmp.eq.s32.totalorder %s15, 0
      %p208 = por %p206, %p207
      %p209 = scmp.ne.s32.totalorder %s201, %s203
      %p210 = scmp.eq.s32.totalorder %s20, 1
      %p211 = por %p209, %p210
      %p212 = scmp.ne.s32.totalorder %s203, %s204
      %p213 = scmp.eq.s32.totalorder %s20, 0
      %p214 = por %p212, %p213
      %p215 = scmp.ne.s32.totalorder %s203, %s204
      %p216 = scmp.eq.s32.totalorder %s21, 1
      %p217 = por %p215, %p216
      %p219 = scmp.ne.s32.totalorder %s204, %s218
      %p220 = scmp.eq.s32.totalorder %s21, 0
      %p221 = por %p219, %p220
      %s222 = ssub.s32 %s15, %s22
      %p223 = scmp.eq.s32.totalorder %s222, 0
      %s225 = sadd.s32 %s224, 1
      %s226 = scalar_select %p223, %s224, %s225
      %p229 = pneg %p223
      %p230 = scmp.eq.s32.totalorder %s15, 1
      %p231 = por %p229, %p230
      %p232 = scmp.ne.s32.totalorder %s224, %s227
      %p233 = scmp.eq.s32.totalorder %s15, 0
      %p234 = por %p232, %p233
      %p235 = scmp.ne.s32.totalorder %s224, %s227
      %p236 = scmp.eq.s32.totalorder %s20, 1
      %p237 = por %p235, %p236
      %p238 = scmp.ne.s32.totalorder %s227, %s228
      %p239 = scmp.eq.s32.totalorder %s20, 0
      %p240 = por %p238, %p239
      %p241 = scmp.ne.s32.totalorder %s227, %s228
      %p242 = scmp.eq.s32.totalorder %s21, 1
      %p243 = por %p241, %p242
      %p245 = scmp.ne.s32.totalorder %s228, %s244
      %p246 = scmp.eq.s32.totalorder %s21, 0
      %p247 = por %p245, %p246
      %p248 = scmp.le.s32.totalorder 1, %s15
      %p249 = scmp.lt.s32.totalorder %s15, 3
      %p250 = pnand %p248, %p249
      %p251 = pneg %p250
      // Predicated region
      $region9: #{iseflow_forward.1} parent=5 // pred_check
        _
      $region10: #{iseflow_forward.1} parent=5 // pred_check_branch
        %253 = sbr.rel (%p250) target = $region12
      $region11: #{iseflow_forward.1} parent=5 // pred_region
        %s254 = ssub.s32 %s15, 1
        // Predicated region
        $region13: #{iseflow_forward.1} parent=11 // pred_check
          %p255 = pneg %p88
        $region14: #{iseflow_forward.1} parent=11 // pred_check_branch
          %257 = sbr.rel (%p255) target = $region16
        $region15: #{iseflow_forward.1} parent=11 // pred_region
          _
        $region16: #{iseflow_forward.1} parent=11 // pred_fallthru
          _
        // Predicated region
        $region17: #{iseflow_forward.1} parent=11 // pred_check
          %p258 = pneg %p109
        $region18: #{iseflow_forward.1} parent=11 // pred_check_branch
          %260 = sbr.rel (%p258) target = $region20
        $region19: #{iseflow_forward.1} parent=11 // pred_region
          _
        $region20: #{iseflow_forward.1} parent=11 // pred_fallthru
          _
        // Predicated region
        $region21: #{iseflow_forward.1} parent=11 // pred_check
          %p261 = pneg %p130
        $region22: #{iseflow_forward.1} parent=11 // pred_check_branch
          %263 = sbr.rel (%p261) target = $region24
        $region23: #{iseflow_forward.1} parent=11 // pred_region
          _
        $region24: #{iseflow_forward.1} parent=11 // pred_fallthru
          _
        // Predicated region
        $region25: #{iseflow_forward.1} parent=11 // pred_check
          %p264 = pneg %p151
        $region26: #{iseflow_forward.1} parent=11 // pred_check_branch
          %266 = sbr.rel (%p264) target = $region28
        $region27: #{iseflow_forward.1} parent=11 // pred_region
          _
        $region28: #{iseflow_forward.1} parent=11 // pred_fallthru
          _
        // Predicated region
        $region29: #{iseflow_forward.1} parent=11 // pred_check
          %p267 = pneg %p172
        $region30: #{iseflow_forward.1} parent=11 // pred_check_branch
          %269 = sbr.rel (%p267) target = $region32
        $region31: #{iseflow_forward.1} parent=11 // pred_region
          _
        $region32: #{iseflow_forward.1} parent=11 // pred_fallthru
          _
        // Predicated region
        $region33: #{iseflow_forward.1} parent=11 // pred_check
          %p270 = pneg %p193
        $region34: #{iseflow_forward.1} parent=11 // pred_check_branch
          %272 = sbr.rel (%p270) target = $region36
        $region35: #{iseflow_forward.1} parent=11 // pred_region
          _
        $region36: #{iseflow_forward.1} parent=11 // pred_fallthru
          _
        // Predicated region
        $region37: #{iseflow_forward.1} parent=11 // pred_check
          %p273 = pneg %p214
        $region38: #{iseflow_forward.1} parent=11 // pred_check_branch
          %275 = sbr.rel (%p273) target = $region40
        $region39: #{iseflow_forward.1} parent=11 // pred_region
          _
        $region40: #{iseflow_forward.1} parent=11 // pred_fallthru
          _
      $region12: #{iseflow_forward.1} parent=5 // pred_fallthru
        _
      %p276 = scmp.lt.s32.totalorder %s15, 2
      // Predicated region
      $region41: #{iseflow_forward.1} parent=5 // pred_check
        %p277 = pneg %p276
      $region42: #{iseflow_forward.1} parent=5 // pred_check_branch
        %279 = sbr.rel (%p277) target = $region44
      $region43: #{iseflow_forward.1} parent=5 // pred_region
        // Predicated region
        $region45: #{iseflow_forward.1} parent=43 // pred_check
          %p280 = pneg %p35
        $region46: #{iseflow_forward.1} parent=43 // pred_check_branch
          %282 = sbr.rel (%p280) target = $region48
        $region47: #{iseflow_forward.1} parent=43 // pred_region
          %s283 = sand.u32 %s25, 1
          %s284 = sand.u32 %s25, 1
          %s285 = smul.addr %s284, 64
          %s286 = scalar_lea.vmem [#allocation2], %s285
          %s287 = smul.u32 4, %s15
          %s288 = smul.addr %s287, 8
          %s289 = scalar_lea.vmem %s0, %s288
          // Predicated region
          $region49: #{iseflow_forward.1} parent=47 // pred_check
            _
          $region50: #{iseflow_forward.1} parent=47 // pred_check_branch
            %291 = sbr.rel (0) target = $region52
          $region51: #{iseflow_forward.1} parent=47 // pred_region
            // Predicated region
            $region53: #{iseflow_forward.1} parent=51 // pred_check
              _
            $region54: #{iseflow_forward.1} parent=51 // pred_check_branch
              %293 = sbr.rel (0) target = $region56
            $region55: #{iseflow_forward.1} parent=51 // pred_region
              loop: start=0, step=1, limit=1
              $region57: #{iseflow_forward.1} parent=55 // loop_pre_header
                _
              $region58: #{iseflow_forward.1} parent=55 // loop_header
                %s295 = sphi 0, %s299
                %p296 = scmp.ge.s32.totalorder %s295, 1
                %s300 = sphi %s289, %s289
                %s301 = sphi %s286, %s286
              $region59: #{iseflow_forward.1} parent=55 // loop_header_branch
                %298 = sbr.rel (%p296) target = $region63
              $region60: #{iseflow_forward.1} parent=55 // loop_body
                %v302 = vld [vmem:[%s300] sm:$0xff]
                %303 = vst [vmem:[%s301] sm:$0xff] %v302
                %v304 = vld [vmem:[%s300 + $0x8] sm:$0xff]
                %305 = vst [vmem:[%s301 + $0x8] sm:$0xff] %v304
                %v306 = vld [vmem:[%s300 + $0x10] sm:$0xff]
                %307 = vst [vmem:[%s301 + $0x10] sm:$0xff] %v306
                %v308 = vld [vmem:[%s300 + $0x18] sm:$0xff]
                %309 = vst [vmem:[%s301 + $0x18] sm:$0xff] %v308
                %v310 = vld [vmem:[%s300 + $0x40] sm:$0xff]
                %311 = vst [vmem:[%s301 + $0x20] sm:$0xff] %v310
                %v312 = vld [vmem:[%s300 + $0x48] sm:$0xff]
                %313 = vst [vmem:[%s301 + $0x28] sm:$0xff] %v312
                %v314 = vld [vmem:[%s300 + $0x50] sm:$0xff]
                %315 = vst [vmem:[%s301 + $0x30] sm:$0xff] %v314
                %v316 = vld [vmem:[%s300 + $0x58] sm:$0xff]
                %317 = vst [vmem:[%s301 + $0x38] sm:$0xff] %v316
              $region61: #{iseflow_forward.1} parent=55 // loop_footer
                %s299 = sadd.s32 1, %s295
              $region62: #{iseflow_forward.1} parent=55 // loop_footer_branch
                %294 = sbr.rel target = $region58
              $region63: #{iseflow_forward.1} parent=55 // loop_exit
                _
            $region56: #{iseflow_forward.1} parent=51 // pred_fallthru
              _
            // Predicated region
            $region64: #{iseflow_forward.1} parent=51 // pred_check
              _
            $region65: #{iseflow_forward.1} parent=51 // pred_check_branch
              %319 = sbr.rel target = $region67
            $region66: #{iseflow_forward.1} parent=51 // pred_region
              _
            $region67: #{iseflow_forward.1} parent=51 // pred_fallthru
              _
          $region52: #{iseflow_forward.1} parent=47 // pred_fallthru
            _
          %320 = vnop
        $region48: #{iseflow_forward.1} parent=43 // pred_fallthru
          _
        // Predicated region
        $region68: #{iseflow_forward.1} parent=43 // pred_check
          %p321 = pneg %p61
        $region69: #{iseflow_forward.1} parent=43 // pred_check_branch
          %323 = sbr.rel (%p321) target = $region71
        $region70: #{iseflow_forward.1} parent=43 // pred_region
          %s324 = sand.u32 %s51, 1
          %s325 = sand.u32 %s51, 1
          %s326 = smul.addr %s325, 416
          %s327 = scalar_lea.vmem [#allocation3], %s326
          %s328 = smul.u32 4, %s15
          %s329 = smul.addr %s328, 8
          %s330 = scalar_lea.vmem %s1, %s329
          // Predicated region
          $region72: #{iseflow_forward.1} parent=70 // pred_check
            _
          $region73: #{iseflow_forward.1} parent=70 // pred_check_branch
            %332 = sbr.rel (0) target = $region75
          $region74: #{iseflow_forward.1} parent=70 // pred_region
            // Predicated region
            $region76: #{iseflow_forward.1} parent=74 // pred_check
              _
            $region77: #{iseflow_forward.1} parent=74 // pred_check_branch
              %334 = sbr.rel (0) target = $region79
            $region78: #{iseflow_forward.1} parent=74 // pred_region
              loop: start=0, step=1, limit=1
              $region80: #{iseflow_forward.1} parent=78 // loop_pre_header
                _
              $region81: #{iseflow_forward.1} parent=78 // loop_header
                %s336 = sphi 0, %s340
                %p337 = scmp.ge.s32.totalorder %s336, 1
                %s341 = sphi %s330, %s330
                %s342 = sphi %s327, %s327
              $region82: #{iseflow_forward.1} parent=78 // loop_header_branch
                %339 = sbr.rel (%p337) target = $region86
              $region83: #{iseflow_forward.1} parent=78 // loop_body
                %v343 = vld [vmem:[%s341] sm:$0xff]
                %344 = vst [vmem:[%s342] sm:$0xff] %v343
                %v345 = vld [vmem:[%s341 + $0x8] sm:$0xff]
                %346 = vst [vmem:[%s342 + $0x8] sm:$0xff] %v345
                %v347 = vld [vmem:[%s341 + $0x10] sm:$0xff]
                %348 = vst [vmem:[%s342 + $0x10] sm:$0xff] %v347
                %v349 = vld [vmem:[%s341 + $0x18] sm:$0xff]
                %350 = vst [vmem:[%s342 + $0x18] sm:$0xff] %v349
                %v351 = vld [vmem:[%s341 + $0x40] sm:$0xff]
                %352 = vst [vmem:[%s342 + $0x20] sm:$0xff] %v351
                %v353 = vld [vmem:[%s341 + $0x48] sm:$0xff]
                %354 = vst [vmem:[%s342 + $0x28] sm:$0xff] %v353
                %v355 = vld [vmem:[%s341 + $0x50] sm:$0xff]
                %356 = vst [vmem:[%s342 + $0x30] sm:$0xff] %v355
                %v357 = vld [vmem:[%s341 + $0x58] sm:$0xff]
                %358 = vst [vmem:[%s342 + $0x38] sm:$0xff] %v357
                %v359 = vld [vmem:[%s341 + $0x80] sm:$0xff]
                %360 = vst [vmem:[%s342 + $0x40] sm:$0xff] %v359
                %v361 = vld [vmem:[%s341 + $0x88] sm:$0xff]
                %362 = vst [vmem:[%s342 + $0x48] sm:$0xff] %v361
                %v363 = vld [vmem:[%s341 + $0x90] sm:$0xff]
                %364 = vst [vmem:[%s342 + $0x50] sm:$0xff] %v363
                %v365 = vld [vmem:[%s341 + $0x98] sm:$0xff]
                %366 = vst [vmem:[%s342 + $0x58] sm:$0xff] %v365
                %v367 = vld [vmem:[%s341 + $0xc0] sm:$0xff]
                %368 = vst [vmem:[%s342 + $0x60] sm:$0xff] %v367
                %v369 = vld [vmem:[%s341 + $0xc8] sm:$0xff]
                %370 = vst [vmem:[%s342 + $0x68] sm:$0xff] %v369
                %v371 = vld [vmem:[%s341 + $0xd0] sm:$0xff]
                %372 = vst [vmem:[%s342 + $0x70] sm:$0xff] %v371
                %v373 = vld [vmem:[%s341 + $0xd8] sm:$0xff]
                %374 = vst [vmem:[%s342 + $0x78] sm:$0xff] %v373
                %v375 = vld [vmem:[%s341 + $0x100] sm:$0xff]
                %376 = vst [vmem:[%s342 + $0x80] sm:$0xff] %v375
                %v377 = vld [vmem:[%s341 + $0x108] sm:$0xff]
                %378 = vst [vmem:[%s342 + $0x88] sm:$0xff] %v377
                %v379 = vld [vmem:[%s341 + $0x110] sm:$0xff]
                %380 = vst [vmem:[%s342 + $0x90] sm:$0xff] %v379
                %v381 = vld [vmem:[%s341 + $0x118] sm:$0xff]
                %382 = vst [vmem:[%s342 + $0x98] sm:$0xff] %v381
                %v383 = vld [vmem:[%s341 + $0x140] sm:$0xff]
                %384 = vst [vmem:[%s342 + $0xa0] sm:$0xff] %v383
                %v385 = vld [vmem:[%s341 + $0x148] sm:$0xff]
                %386 = vst [vmem:[%s342 + $0xa8] sm:$0xff] %v385
                %v387 = vld [vmem:[%s341 + $0x150] sm:$0xff]
                %388 = vst [vmem:[%s342 + $0xb0] sm:$0xff] %v387
                %v389 = vld [vmem:[%s341 + $0x158] sm:$0xff]
                %390 = vst [vmem:[%s342 + $0xb8] sm:$0xff] %v389
                %v391 = vld [vmem:[%s341 + $0x180] sm:$0xff]
                %392 = vst [vmem:[%s342 + $0xc0] sm:$0xff] %v391
                %v393 = vld [vmem:[%s341 + $0x188] sm:$0xff]
                %394 = vst [vmem:[%s342 + $0xc8] sm:$0xff] %v393
                %v395 = vld [vmem:[%s341 + $0x190] sm:$0xff]
                %396 = vst [vmem:[%s342 + $0xd0] sm:$0xff] %v395
                %v397 = vld [vmem:[%s341 + $0x198] sm:$0xff]
                %398 = vst [vmem:[%s342 + $0xd8] sm:$0xff] %v397
                %v399 = vld [vmem:[%s341 + $0x1c0] sm:$0xff]
                %400 = vst [vmem:[%s342 + $0xe0] sm:$0xff] %v399
                %v401 = vld [vmem:[%s341 + $0x1c8] sm:$0xff]
                %402 = vst [vmem:[%s342 + $0xe8] sm:$0xff] %v401
                %v403 = vld [vmem:[%s341 + $0x1d0] sm:$0xff]
                %404 = vst [vmem:[%s342 + $0xf0] sm:$0xff] %v403
                %v405 = vld [vmem:[%s341 + $0x1d8] sm:$0xff]
                %406 = vst [vmem:[%s342 + $0xf8] sm:$0xff] %v405
                %v407 = vld [vmem:[%s341 + $0x200] sm:$0xff]
                %408 = vst [vmem:[%s342 + $0x100] sm:$0xff] %v407
                %v409 = vld [vmem:[%s341 + $0x208] sm:$0xff]
                %410 = vst [vmem:[%s342 + $0x108] sm:$0xff] %v409
                %v411 = vld [vmem:[%s341 + $0x210] sm:$0xff]
                %412 = vst [vmem:[%s342 + $0x110] sm:$0xff] %v411
                %v413 = vld [vmem:[%s341 + $0x218] sm:$0xff]
                %414 = vst [vmem:[%s342 + $0x118] sm:$0xff] %v413
                %v415 = vld [vmem:[%s341 + $0x240] sm:$0xff]
                %416 = vst [vmem:[%s342 + $0x120] sm:$0xff] %v415
                %v417 = vld [vmem:[%s341 + $0x248] sm:$0xff]
                %418 = vst [vmem:[%s342 + $0x128] sm:$0xff] %v417
                %v419 = vld [vmem:[%s341 + $0x250] sm:$0xff]
                %420 = vst [vmem:[%s342 + $0x130] sm:$0xff] %v419
                %v421 = vld [vmem:[%s341 + $0x258] sm:$0xff]
                %422 = vst [vmem:[%s342 + $0x138] sm:$0xff] %v421
                %v423 = vld [vmem:[%s341 + $0x280] sm:$0xff]
                %424 = vst [vmem:[%s342 + $0x140] sm:$0xff] %v423
                %v425 = vld [vmem:[%s341 + $0x288] sm:$0xff]
                %426 = vst [vmem:[%s342 + $0x148] sm:$0xff] %v425
                %v427 = vld [vmem:[%s341 + $0x290] sm:$0xff]
                %428 = vst [vmem:[%s342 + $0x150] sm:$0xff] %v427
                %v429 = vld [vmem:[%s341 + $0x298] sm:$0xff]
                %430 = vst [vmem:[%s342 + $0x158] sm:$0xff] %v429
                %v431 = vld [vmem:[%s341 + $0x2c0] sm:$0xff]
                %432 = vst [vmem:[%s342 + $0x160] sm:$0xff] %v431
                %v433 = vld [vmem:[%s341 + $0x2c8] sm:$0xff]
                %434 = vst [vmem:[%s342 + $0x168] sm:$0xff] %v433
                %v435 = vld [vmem:[%s341 + $0x2d0] sm:$0xff]
                %436 = vst [vmem:[%s342 + $0x170] sm:$0xff] %v435
                %v437 = vld [vmem:[%s341 + $0x2d8] sm:$0xff]
                %438 = vst [vmem:[%s342 + $0x178] sm:$0xff] %v437
                %v439 = vld [vmem:[%s341 + $0x300] sm:$0xff]
                %440 = vst [vmem:[%s342 + $0x180] sm:$0xff] %v439
                %v441 = vld [vmem:[%s341 + $0x308] sm:$0xff]
                %442 = vst [vmem:[%s342 + $0x188] sm:$0xff] %v441
                %v443 = vld [vmem:[%s341 + $0x310] sm:$0xff]
                %444 = vst [vmem:[%s342 + $0x190] sm:$0xff] %v443
                %v445 = vld [vmem:[%s341 + $0x318] sm:$0xff]
                %446 = vst [vmem:[%s342 + $0x198] sm:$0xff] %v445
              $region84: #{iseflow_forward.1} parent=78 // loop_footer
                %s340 = sadd.s32 1, %s336
              $region85: #{iseflow_forward.1} parent=78 // loop_footer_branch
                %335 = sbr.rel target = $region81
              $region86: #{iseflow_forward.1} parent=78 // loop_exit
                _
            $region79: #{iseflow_forward.1} parent=74 // pred_fallthru
              _
            // Predicated region
            $region87: #{iseflow_forward.1} parent=74 // pred_check
              _
            $region88: #{iseflow_forward.1} parent=74 // pred_check_branch
              %448 = sbr.rel target = $region90
            $region89: #{iseflow_forward.1} parent=74 // pred_region
              _
            $region90: #{iseflow_forward.1} parent=74 // pred_fallthru
              _
          $region75: #{iseflow_forward.1} parent=70 // pred_fallthru
            _
          %449 = vnop
        $region71: #{iseflow_forward.1} parent=43 // pred_fallthru
          _
      $region44: #{iseflow_forward.1} parent=5 // pred_fallthru
        _
      %p450 = scmp.le.s32.totalorder 1, %s15
      %p451 = scmp.lt.s32.totalorder %s15, 3
      %p452 = pnand %p450, %p451
      %p453 = pneg %p452
      // Predicated region
      $region91: #{iseflow_forward.1} parent=5 // pred_check
        _
      $region92: #{iseflow_forward.1} parent=5 // pred_check_branch
        %455 = sbr.rel (%p452) target = $region94
      $region93: #{iseflow_forward.1} parent=5 // pred_region
        %s456 = ssub.s32 %s15, 1
        %s457 = sand.u32 %s28, 1
        %s458 = sand.u32 %s28, 1
        %s459 = smul.addr %s458, 64
        %s460 = scalar_lea.vmem [#allocation2], %s459
        // Predicated region
        $region95: #{iseflow_forward.1} parent=93 // pred_check
          %p461 = pneg %p41
        $region96: #{iseflow_forward.1} parent=93 // pred_check_branch
          %463 = sbr.rel (%p461) target = $region98
        $region97: #{iseflow_forward.1} parent=93 // pred_region
          _
        $region98: #{iseflow_forward.1} parent=93 // pred_fallthru
          _
        %s464 = sand.u32 %s54, 1
        %s465 = sand.u32 %s54, 1
        %s466 = smul.addr %s465, 416
        %s467 = scalar_lea.vmem [#allocation3], %s466
        // Predicated region
        $region99: #{iseflow_forward.1} parent=93 // pred_check
          %p468 = pneg %p67
        $region100: #{iseflow_forward.1} parent=93 // pred_check_branch
          %470 = sbr.rel (%p468) target = $region102
        $region101: #{iseflow_forward.1} parent=93 // pred_region
          _
        $region102: #{iseflow_forward.1} parent=93 // pred_fallthru
          _
        %s471 = sand.u32 %s28, 1
        %s472 = sand.u32 %s28, 1
        %s473 = smul.addr %s472, 64
        %s474 = scalar_lea.vmem [#allocation2], %s473
        %p475 = pneg %p41
        %p476 = pneg %p38
        %s477 = sand.u32 %s54, 1
        %s478 = sand.u32 %s54, 1
        %s479 = smul.addr %s478, 416
        %s480 = scalar_lea.vmem [#allocation3], %s479
        %p481 = pneg %p67
        %p482 = pneg %p64
        %p483 = pneg %p88
        %p484 = pneg %p85
        %p485 = pneg %p109
        %p486 = pneg %p106
        %p487 = pneg %p130
        %p488 = pneg %p127
        %p489 = pneg %p151
        %p490 = pneg %p148
        %p491 = pneg %p172
        %p492 = pneg %p169
        %p493 = pneg %p193
        %p494 = pneg %p190
        %p495 = pneg %p214
        %p496 = pneg %p211
        %p497 = pneg %p240
        %p498 = pneg %p237
        %s499 = smul.u32 4, %s20
        %p500 = scmp.lt.s32.totalorder %s499, 7
        %s501 = scalar_select %p500, %s499, 7
        %s502 = smul.addr %s501, 4
        %s503 = scalar_lea.vmem %s9, %s502
        %s504 = smul.u32 4, %s20
        %s505 = smul.u32 4, %s20
        %s506 = smul.u32 4, %s20
        %p507 = scmp.lt.s32.totalorder %s506, 7
        %s508 = scalar_select %p507, %s506, 7
        %s509 = smul.addr %s508, 4
        %s510 = scalar_lea.vmem %s9, %s509
        %s511 = smul.u32 4, %s20
        %v512 = vld [vmem:[%s460] sm:$0xff]
        %v513 = vld [vmem:[%s460 + $0x8] sm:$0xff]
        %v514 = vld [vmem:[%s460 + $0x10] sm:$0xff]
        %v515 = vld [vmem:[%s460 + $0x18] sm:$0xff]
        %v516 = vld [vmem:[%s460 + $0x20] sm:$0xff]
        %v517 = vld [vmem:[%s460 + $0x28] sm:$0xff]
        %v518 = vld [vmem:[%s460 + $0x30] sm:$0xff]
        %v519 = vld [vmem:[%s460 + $0x38] sm:$0xff]
        %v520 = vld [vmem:[%s2] sm:$0xff]
        %v521 = vld [vmem:[%s2 + $0x8] sm:$0xff]
        %v522 = vld [vmem:[%s2 + $0x10] sm:$0xff]
        %v523 = vld [vmem:[%s2 + $0x18] sm:$0xff]
        %v524 = vld [vmem:[%s2 + $0x20] sm:$0xff]
        %v525 = vld [vmem:[%s2 + $0x28] sm:$0xff]
        %v526 = vld [vmem:[%s2 + $0x30] sm:$0xff]
        %v527 = vld [vmem:[%s2 + $0x38] sm:$0xff]
        %v528 = vld [vmem:[%s2 + $0x40] sm:$0xff]
        %v529 = vld [vmem:[%s2 + $0x48] sm:$0xff]
        %v530 = vld [vmem:[%s2 + $0x50] sm:$0xff]
        %v531 = vld [vmem:[%s2 + $0x58] sm:$0xff]
        %v532 = vld [vmem:[%s2 + $0x60] sm:$0xff]
        %v533 = vld [vmem:[%s2 + $0x68] sm:$0xff]
        %v534 = vld [vmem:[%s2 + $0x70] sm:$0xff]
        %v535 = vld [vmem:[%s2 + $0x78] sm:$0xff]
        %v536 = vld [vmem:[%s2 + $0x80] sm:$0xff]
        %v537 = vld [vmem:[%s2 + $0x88] sm:$0xff]
        %v538 = vld [vmem:[%s2 + $0x90] sm:$0xff]
        %v539 = vld [vmem:[%s2 + $0x98] sm:$0xff]
        %v540 = vld [vmem:[%s3] sm:$0xff]
        %v541 = vld [vmem:[%s3 + $0x8] sm:$0xff]
        %v542 = vld [vmem:[%s3 + $0x10] sm:$0xff]
        %v543 = vld [vmem:[%s3 + $0x18] sm:$0xff]
        %v544 = vld [vmem:[%s3 + $0x20] sm:$0xff]
        %v545 = vld [vmem:[%s3 + $0x28] sm:$0xff]
        %v546 = vld [vmem:[%s3 + $0x30] sm:$0xff]
        %v547 = vld [vmem:[%s3 + $0x38] sm:$0xff]
        %v548 = vld [vmem:[%s3 + $0x40] sm:$0xff]
        %v549 = vld [vmem:[%s3 + $0x48] sm:$0xff]
        %v550 = vld [vmem:[%s3 + $0x50] sm:$0xff]
        %v551 = vld [vmem:[%s3 + $0x58] sm:$0xff]
        %v552 = vld [vmem:[%s3 + $0x60] sm:$0xff]
        %v553 = vld [vmem:[%s3 + $0x68] sm:$0xff]
        %v554 = vld [vmem:[%s3 + $0x70] sm:$0xff]
        %v555 = vld [vmem:[%s3 + $0x78] sm:$0xff]
        %v556 = vld [vmem:[%s3 + $0x80] sm:$0xff]
        %v557 = vld [vmem:[%s3 + $0x88] sm:$0xff]
        %v558 = vld [vmem:[%s3 + $0x90] sm:$0xff]
        %v559 = vld [vmem:[%s3 + $0x98] sm:$0xff]
        %561 = vset.pattern.permute.xlu0 0
        %562 = vperm.xlu0 %561, %v540
        %v563 = vpop.permute.xlu0 %562
        %566 = vset.pattern.permute.xlu0 0
        %567 = vperm.xlu0 %566, %v541
        %v568 = vpop.permute.xlu0 %567
        %571 = vset.pattern.permute.xlu0 0
        %572 = vperm.xlu0 %571, %v542
        %v573 = vpop.permute.xlu0 %572
        %576 = vset.pattern.permute.xlu0 0
        %577 = vperm.xlu0 %576, %v543
        %v578 = vpop.permute.xlu0 %577
        %581 = vset.pattern.permute.xlu0 0
        %582 = vperm.xlu0 %581, %v544
        %v583 = vpop.permute.xlu0 %582
        %586 = vset.pattern.permute.xlu0 0
        %587 = vperm.xlu0 %586, %v545
        %v588 = vpop.permute.xlu0 %587
        %591 = vset.pattern.permute.xlu0 0
        %592 = vperm.xlu0 %591, %v546
        %v593 = vpop.permute.xlu0 %592
        %596 = vset.pattern.permute.xlu0 0
        %597 = vperm.xlu0 %596, %v547
        %v598 = vpop.permute.xlu0 %597
        %601 = vset.pattern.permute.xlu0 0
        %602 = vperm.xlu0 %601, %v548
        %v603 = vpop.permute.xlu0 %602
        %606 = vset.pattern.permute.xlu0 0
        %607 = vperm.xlu0 %606, %v549
        %v608 = vpop.permute.xlu0 %607
        %611 = vset.pattern.permute.xlu0 0
        %612 = vperm.xlu0 %611, %v550
        %v613 = vpop.permute.xlu0 %612
        %616 = vset.pattern.permute.xlu0 0
        %617 = vperm.xlu0 %616, %v551
        %v618 = vpop.permute.xlu0 %617
        %621 = vset.pattern.permute.xlu0 0
        %622 = vperm.xlu0 %621, %v552
        %v623 = vpop.permute.xlu0 %622
        %626 = vset.pattern.permute.xlu0 0
        %627 = vperm.xlu0 %626, %v553
        %v628 = vpop.permute.xlu0 %627
        %631 = vset.pattern.permute.xlu0 0
        %632 = vperm.xlu0 %631, %v554
        %v633 = vpop.permute.xlu0 %632
        %636 = vset.pattern.permute.xlu0 0
        %637 = vperm.xlu0 %636, %v555
        %v638 = vpop.permute.xlu0 %637
        %641 = vset.pattern.permute.xlu0 0
        %642 = vperm.xlu0 %641, %v556
        %v643 = vpop.permute.xlu0 %642
        %646 = vset.pattern.permute.xlu0 0
        %647 = vperm.xlu0 %646, %v557
        %v648 = vpop.permute.xlu0 %647
        %651 = vset.pattern.permute.xlu0 0
        %652 = vperm.xlu0 %651, %v558
        %v653 = vpop.permute.xlu0 %652
        %656 = vset.pattern.permute.xlu0 0
        %657 = vperm.xlu0 %656, %v559
        %v658 = vpop.permute.xlu0 %657
        %vm660 = vcmask 130048
        %v662 = vsel %vm660, %v520, 0
        %v665 = vsel %vm660, %v521, 0
        %v668 = vsel %vm660, %v522, 0
        %v671 = vsel %vm660, %v523, 0
        %v674 = vsel %vm660, %v524, 0
        %v677 = vsel %vm660, %v525, 0
        %v680 = vsel %vm660, %v526, 0
        %v683 = vsel %vm660, %v527, 0
        %v686 = vsel %vm660, %v528, 0
        %v689 = vsel %vm660, %v529, 0
        %v692 = vsel %vm660, %v530, 0
        %v695 = vsel %vm660, %v531, 0
        %v698 = vsel %vm660, %v532, 0
        %v701 = vsel %vm660, %v533, 0
        %v704 = vsel %vm660, %v534, 0
        %v707 = vsel %vm660, %v535, 0
        %v710 = vsel %vm660, %v536, 0
        %v713 = vsel %vm660, %v537, 0
        %v716 = vsel %vm660, %v538, 0
        %v719 = vsel %vm660, %v539, 0
        %721 = vmatprep.subr.mxu0 %v513
        %722 = vmatpush1.msra.mxu0 %v512
        %723 = vmatprep.subr.mxu0 %v517
        %724 = vmatpush1.msra.mxu0 %v516
        %725 = vmatprep.subr.mxu0 0.0
        %726 = vmatpush1.msra.mxu0 0.0
        %727 = vmatprep.subr.mxu0 0.0
        %728 = vmatpush1.msra.mxu0 0.0
        %729 = vmatprep.subr.mxu0 0.0
        %730 = vmatpush1.msra.mxu0 0.0
        %731 = vmatprep.subr.mxu0 0.0
        %732 = vmatpush1.msra.mxu0 0.0
        %733 = vmatprep.subr.mxu0 0.0
        %734 = vmatpush1.msra.mxu0 0.0
        %735 = vmatprep.subr.mxu0 0.0
        %736 = vmatpush1.msra.mxu0 0.0
        %737 = vmatprep.subr.mxu0 0.0
        %738 = vmatpush1.msra.mxu0 0.0
        %739 = vmatprep.subr.mxu0 0.0
        %740 = vmatpush1.msra.mxu0 0.0
        %741 = vmatprep.subr.mxu0 0.0
        %742 = vmatpush1.msra.mxu0 0.0
        %743 = vmatprep.subr.mxu0 0.0
        %744 = vmatpush1.msra.mxu0 0.0
        %745 = vmatprep.subr.mxu0 0.0
        %746 = vmatpush1.msra.mxu0 0.0
        %747 = vmatprep.subr.mxu0 0.0
        %748 = vmatpush1.msra.mxu0 0.0
        %749 = vmatprep.subr.mxu0 0.0
        %750 = vmatpush1.msra.mxu0 0.0
        %751 = vmatprep.subr.mxu0 0.0
        %752 = vmatpush1.msra.mxu0 0.0
        %753 = vmatprep.subr.mxu0 0.0
        %754 = vmatpush1.msra.mxu0 0.0
        %755 = vmatprep.subr.mxu0 0.0
        %756 = vmatpush1.msra.mxu0 0.0
        %757 = vmatprep.subr.mxu0 0.0
        %758 = vmatpush1.msra.mxu0 0.0
        %759 = vmatprep.subr.mxu0 0.0
        %760 = vmatpush1.msra.mxu0 0.0
        %761 = vmatprep.subr.mxu0 0.0
        %762 = vmatpush1.msra.mxu0 0.0
        %763 = vmatprep.subr.mxu0 0.0
        %764 = vmatpush1.msra.mxu0 0.0
        %765 = vmatprep.subr.mxu0 0.0
        %766 = vmatpush1.msra.mxu0 0.0
        %767 = vmatprep.subr.mxu0 0.0
        %768 = vmatpush1.msra.mxu0 0.0
        %769 = vmatprep.subr.mxu0 0.0
        %770 = vmatpush1.msra.mxu0 0.0
        %771 = vmatprep.subr.mxu0 0.0
        %772 = vmatpush1.msra.mxu0 0.0
        %773 = vmatprep.subr.mxu0 0.0
        %774 = vmatpush1.msra.mxu0 0.0
        %775 = vmatprep.subr.mxu0 0.0
        %776 = vmatpush1.msra.mxu0 0.0
        %777 = vmatprep.subr.mxu0 0.0
        %778 = vmatpush1.msra.mxu0 0.0
        %779 = vmatprep.subr.mxu0 0.0
        %780 = vmatpush1.msra.mxu0 0.0
        %781 = vmatprep.subr.mxu0 0.0
        %782 = vmatpush1.msra.mxu0 0.0
        %783 = vmatprep.subr.mxu0 0.0
        %784 = vmatpush1.msra.mxu0 0.0
        %785 = vmatprep.mubr.f32.mxu0 0.0
        %786 = vmatmul.mubr.f32.gmra.mrb[0].mxu0 %v662
        %v787 = vpop.f32.mrb[0].mxu0
        %v788 = vadd.f32 %v563, %v787
        %v789 = vpop.f32.mrb[0].mxu0
        %v790 = vadd.f32 %v563, %v789
        %791 = vmatprep.mubr.f32.mxu0 0.0
        %792 = vmatmul.mubr.f32.gmra.mrb[0].mxu0 %v665
        %v793 = vpop.f32.mrb[0].mxu0
        %v794 = vadd.f32 %v568, %v793
        %v795 = vpop.f32.mrb[0].mxu0
        %v796 = vadd.f32 %v568, %v795
        %797 = vmatprep.mubr.f32.mxu0 0.0
        %798 = vmatmul.mubr.f32.gmra.mrb[0].mxu0 %v668
        %v799 = vpop.f32.mrb[0].mxu0
        %v800 = vadd.f32 %v573, %v799
        %v801 = vpop.f32.mrb[0].mxu0
        %v802 = vadd.f32 %v573, %v801
        %803 = vmatprep.mubr.f32.mxu0 0.0
        %804 = vmatmul.mubr.f32.gmra.mrb[0].mxu0 %v671
        %v805 = vpop.f32.mrb[0].mxu0
        %v806 = vadd.f32 %v578, %v805
        %v807 = vpop.f32.mrb[0].mxu0
        %v808 = vadd.f32 %v578, %v807
        %809 = vmatprep.mubr.f32.mxu0 0.0
        %810 = vmatmul.mubr.f32.gmra.mrb[0].mxu0 %v674
        %v811 = vpop.f32.mrb[0].mxu0
        %v812 = vadd.f32 %v583, %v811
        %v813 = vpop.f32.mrb[0].mxu0
        %v814 = vadd.f32 %v583, %v813
        %815 = vmatprep.mubr.f32.mxu0 0.0
        %816 = vmatmul.mubr.f32.gmra.mrb[0].mxu0 %v677
        %v817 = vpop.f32.mrb[0].mxu0
        %v818 = vadd.f32 %v588, %v817
        %v819 = vpop.f32.mrb[0].mxu0
        %v820 = vadd.f32 %v588, %v819
        %821 = vmatprep.mubr.f32.mxu0 0.0
        %822 = vmatmul.mubr.f32.gmra.mrb[0].mxu0 %v680
        %v823 = vpop.f32.mrb[0].mxu0
        %v824 = vadd.f32 %v593, %v823
        %v825 = vpop.f32.mrb[0].mxu0
        %v826 = vadd.f32 %v593, %v825
        %827 = vmatprep.mubr.f32.mxu0 0.0
        %828 = vmatmul.mubr.f32.gmra.mrb[0].mxu0 %v683
        %v829 = vpop.f32.mrb[0].mxu0
        %v830 = vadd.f32 %v598, %v829
        %v831 = vpop.f32.mrb[0].mxu0
        %v832 = vadd.f32 %v598, %v831
        %833 = vmatprep.mubr.f32.mxu0 0.0
        %834 = vmatmul.mubr.f32.gmra.mrb[0].mxu0 %v686
        %v835 = vpop.f32.mrb[0].mxu0
        %v836 = vadd.f32 %v603, %v835
        %v837 = vpop.f32.mrb[0].mxu0
        %v838 = vadd.f32 %v603, %v837
        %839 = vmatprep.mubr.f32.mxu0 0.0
        %840 = vmatmul.mubr.f32.gmra.mrb[0].mxu0 %v689
        %v841 = vpop.f32.mrb[0].mxu0
        %v842 = vadd.f32 %v608, %v841
        %v843 = vpop.f32.mrb[0].mxu0
        %v844 = vadd.f32 %v608, %v843
        %845 = vmatprep.mubr.f32.mxu0 0.0
        %846 = vmatmul.mubr.f32.gmra.mrb[0].mxu0 %v692
        %v847 = vpop.f32.mrb[0].mxu0
        %v848 = vadd.f32 %v613, %v847
        %v849 = vpop.f32.mrb[0].mxu0
        %v850 = vadd.f32 %v613, %v849
        %851 = vmatprep.mubr.f32.mxu0 0.0
        %852 = vmatmul.mubr.f32.gmra.mrb[0].mxu0 %v695
        %v853 = vpop.f32.mrb[0].mxu0
        %v854 = vadd.f32 %v618, %v853
        %v855 = vpop.f32.mrb[0].mxu0
        %v856 = vadd.f32 %v618, %v855
        %857 = vmatprep.mubr.f32.mxu0 0.0
        %858 = vmatmul.mubr.f32.gmra.mrb[0].mxu0 %v698
        %v859 = vpop.f32.mrb[0].mxu0
        %v860 = vadd.f32 %v623, %v859
        %v861 = vpop.f32.mrb[0].mxu0
        %v862 = vadd.f32 %v623, %v861
        %863 = vmatprep.mubr.f32.mxu0 0.0
        %864 = vmatmul.mubr.f32.gmra.mrb[0].mxu0 %v701
        %v865 = vpop.f32.mrb[0].mxu0
        %v866 = vadd.f32 %v628, %v865
        %v867 = vpop.f32.mrb[0].mxu0
        %v868 = vadd.f32 %v628, %v867
        %869 = vmatprep.mubr.f32.mxu0 0.0
        %870 = vmatmul.mubr.f32.gmra.mrb[0].mxu0 %v704
        %v871 = vpop.f32.mrb[0].mxu0
        %v872 = vadd.f32 %v633, %v871
        %v873 = vpop.f32.mrb[0].mxu0
        %v874 = vadd.f32 %v633, %v873
        %875 = vmatprep.mubr.f32.mxu0 0.0
        %876 = vmatmul.mubr.f32.gmra.mrb[0].mxu0 %v707
        %v877 = vpop.f32.mrb[0].mxu0
        %v878 = vadd.f32 %v638, %v877
        %v879 = vpop.f32.mrb[0].mxu0
        %v880 = vadd.f32 %v638, %v879
        %881 = vmatprep.mubr.f32.mxu0 0.0
        %882 = vmatmul.mubr.f32.gmra.mrb[0].mxu0 %v710
        %v883 = vpop.f32.mrb[0].mxu0
        %v884 = vadd.f32 %v643, %v883
        %v885 = vpop.f32.mrb[0].mxu0
        %v886 = vadd.f32 %v643, %v885
        %887 = vmatprep.mubr.f32.mxu0 0.0
        %888 = vmatmul.mubr.f32.gmra.mrb[0].mxu0 %v713
        %v889 = vpop.f32.mrb[0].mxu0
        %v890 = vadd.f32 %v648, %v889
        %v891 = vpop.f32.mrb[0].mxu0
        %v892 = vadd.f32 %v648, %v891
        %893 = vmatprep.mubr.f32.mxu0 0.0
        %894 = vmatmul.mubr.f32.gmra.mrb[0].mxu0 %v716
        %v895 = vpop.f32.mrb[0].mxu0
        %v896 = vadd.f32 %v653, %v895
        %v897 = vpop.f32.mrb[0].mxu0
        %v898 = vadd.f32 %v653, %v897
        %899 = vmatprep.mubr.f32.mxu0 0.0
        %900 = vmatmul.mubr.f32.gmra.mrb[0].mxu0 %v719
        %v901 = vpop.f32.mrb[0].mxu0
        %v902 = vadd.f32 %v658, %v901
        %v903 = vpop.f32.mrb[0].mxu0
        %v904 = vadd.f32 %v658, %v903
        %905 = vdwg.mxu0
        %906 = vmatprep.subr.mxu0 %v515
        %907 = vmatpush1.msra.mxu0 %v514
        %908 = vmatprep.subr.mxu0 %v519
        %909 = vmatpush1.msra.mxu0 %v518
        %910 = vmatprep.subr.mxu0 0.0
        %911 = vmatpush1.msra.mxu0 0.0
        %912 = vmatprep.subr.mxu0 0.0
        %913 = vmatpush1.msra.mxu0 0.0
        %914 = vmatprep.subr.mxu0 0.0
        %915 = vmatpush1.msra.mxu0 0.0
        %916 = vmatprep.subr.mxu0 0.0
        %917 = vmatpush1.msra.mxu0 0.0
        %918 = vmatprep.subr.mxu0 0.0
        %919 = vmatpush1.msra.mxu0 0.0
        %920 = vmatprep.subr.mxu0 0.0
        %921 = vmatpush1.msra.mxu0 0.0
        %922 = vmatprep.subr.mxu0 0.0
        %923 = vmatpush1.msra.mxu0 0.0
        %924 = vmatprep.subr.mxu0 0.0
        %925 = vmatpush1.msra.mxu0 0.0
        %926 = vmatprep.subr.mxu0 0.0
        %927 = vmatpush1.msra.mxu0 0.0
        %928 = vmatprep.subr.mxu0 0.0
        %929 = vmatpush1.msra.mxu0 0.0
        %930 = vmatprep.subr.mxu0 0.0
        %931 = vmatpush1.msra.mxu0 0.0
        %932 = vmatprep.subr.mxu0 0.0
        %933 = vmatpush1.msra.mxu0 0.0
        %934 = vmatprep.subr.mxu0 0.0
        %935 = vmatpush1.msra.mxu0 0.0
        %936 = vmatprep.subr.mxu0 0.0
        %937 = vmatpush1.msra.mxu0 0.0
        %938 = vmatprep.subr.mxu0 0.0
        %939 = vmatpush1.msra.mxu0 0.0
        %940 = vmatprep.subr.mxu0 0.0
        %941 = vmatpush1.msra.mxu0 0.0
        %942 = vmatprep.subr.mxu0 0.0
        %943 = vmatpush1.msra.mxu0 0.0
        %944 = vmatprep.subr.mxu0 0.0
        %945 = vmatpush1.msra.mxu0 0.0
        %946 = vmatprep.subr.mxu0 0.0
        %947 = vmatpush1.msra.mxu0 0.0
        %948 = vmatprep.subr.mxu0 0.0
        %949 = vmatpush1.msra.mxu0 0.0
        %950 = vmatprep.subr.mxu0 0.0
        %951 = vmatpush1.msra.mxu0 0.0
        %952 = vmatprep.subr.mxu0 0.0
        %953 = vmatpush1.msra.mxu0 0.0
        %954 = vmatprep.subr.mxu0 0.0
        %955 = vmatpush1.msra.mxu0 0.0
        %956 = vmatprep.subr.mxu0 0.0
        %957 = vmatpush1.msra.mxu0 0.0
        %958 = vmatprep.subr.mxu0 0.0
        %959 = vmatpush1.msra.mxu0 0.0
        %960 = vmatprep.subr.mxu0 0.0
        %961 = vmatpush1.msra.mxu0 0.0
        %962 = vmatprep.subr.mxu0 0.0
        %963 = vmatpush1.msra.mxu0 0.0
        %964 = vmatprep.subr.mxu0 0.0
        %965 = vmatpush1.msra.mxu0 0.0
        %966 = vmatprep.subr.mxu0 0.0
        %967 = vmatpush1.msra.mxu0 0.0
        %968 = vmatprep.subr.mxu0 0.0
        %969 = vmatpush1.msra.mxu0 0.0
        %970 = vmatprep.mubr.f32.mxu0 0.0
        %971 = vmatmul.mubr.f32.gmra.mrb[0].mxu0 %v662
        %v972 = vpop.f32.mrb[0].mxu0
        %v973 = vadd.f32 %v563, %v972
        %v974 = vpop.f32.mrb[0].mxu0
        %v975 = vadd.f32 %v563, %v974
        %976 = vmatprep.mubr.f32.mxu0 0.0
        %977 = vmatmul.mubr.f32.gmra.mrb[0].mxu0 %v665
        %v978 = vpop.f32.mrb[0].mxu0
        %v979 = vadd.f32 %v568, %v978
        %v980 = vpop.f32.mrb[0].mxu0
        %v981 = vadd.f32 %v568, %v980
        %982 = vmatprep.mubr.f32.mxu0 0.0
        %983 = vmatmul.mubr.f32.gmra.mrb[0].mxu0 %v668
        %v984 = vpop.f32.mrb[0].mxu0
        %v985 = vadd.f32 %v573, %v984
        %v986 = vpop.f32.mrb[0].mxu0
        %v987 = vadd.f32 %v573, %v986
        %988 = vmatprep.mubr.f32.mxu0 0.0
        %989 = vmatmul.mubr.f32.gmra.mrb[0].mxu0 %v671
        %v990 = vpop.f32.mrb[0].mxu0
        %v991 = vadd.f32 %v578, %v990
        %v992 = vpop.f32.mrb[0].mxu0
        %v993 = vadd.f32 %v578, %v992
        %994 = vmatprep.mubr.f32.mxu0 0.0
        %995 = vmatmul.mubr.f32.gmra.mrb[0].mxu0 %v674
        %v996 = vpop.f32.mrb[0].mxu0
        %v997 = vadd.f32 %v583, %v996
        %v998 = vpop.f32.mrb[0].mxu0
        %v999 = vadd.f32 %v583, %v998
        %1000 = vmatprep.mubr.f32.mxu0 0.0
        %1001 = vmatmul.mubr.f32.gmra.mrb[0].mxu0 %v677
        %v1002 = vpop.f32.mrb[0].mxu0
        %v1003 = vadd.f32 %v588, %v1002
        %v1004 = vpop.f32.mrb[0].mxu0
        %v1005 = vadd.f32 %v588, %v1004
        %1006 = vmatprep.mubr.f32.mxu0 0.0
        %1007 = vmatmul.mubr.f32.gmra.mrb[0].mxu0 %v680
        %v1008 = vpop.f32.mrb[0].mxu0
        %v1009 = vadd.f32 %v593, %v1008
        %v1010 = vpop.f32.mrb[0].mxu0
        %v1011 = vadd.f32 %v593, %v1010
        %1012 = vmatprep.mubr.f32.mxu0 0.0
        %1013 = vmatmul.mubr.f32.gmra.mrb[0].mxu0 %v683
        %v1014 = vpop.f32.mrb[0].mxu0
        %v1015 = vadd.f32 %v598, %v1014
        %v1016 = vpop.f32.mrb[0].mxu0
        %v1017 = vadd.f32 %v598, %v1016
        %1018 = vmatprep.mubr.f32.mxu0 0.0
        %1019 = vmatmul.mubr.f32.gmra.mrb[0].mxu0 %v686
        %v1020 = vpop.f32.mrb[0].mxu0
        %v1021 = vadd.f32 %v603, %v1020
        %v1022 = vpop.f32.mrb[0].mxu0
        %v1023 = vadd.f32 %v603, %v1022
        %1024 = vmatprep.mubr.f32.mxu0 0.0
        %1025 = vmatmul.mubr.f32.gmra.mrb[0].mxu0 %v689
        %v1026 = vpop.f32.mrb[0].mxu0
        %v1027 = vadd.f32 %v608, %v1026
        %v1028 = vpop.f32.mrb[0].mxu0
        %v1029 = vadd.f32 %v608, %v1028
        %1030 = vmatprep.mubr.f32.mxu0 0.0
        %1031 = vmatmul.mubr.f32.gmra.mrb[0].mxu0 %v692
        %v1032 = vpop.f32.mrb[0].mxu0
        %v1033 = vadd.f32 %v613, %v1032
        %v1034 = vpop.f32.mrb[0].mxu0
        %v1035 = vadd.f32 %v613, %v1034
        %1036 = vmatprep.mubr.f32.mxu0 0.0
        %1037 = vmatmul.mubr.f32.gmra.mrb[0].mxu0 %v695
        %v1038 = vpop.f32.mrb[0].mxu0
        %v1039 = vadd.f32 %v618, %v1038
        %v1040 = vpop.f32.mrb[0].mxu0
        %v1041 = vadd.f32 %v618, %v1040
        %1042 = vmatprep.mubr.f32.mxu0 0.0
        %1043 = vmatmul.mubr.f32.gmra.mrb[0].mxu0 %v698
        %v1044 = vpop.f32.mrb[0].mxu0
        %v1045 = vadd.f32 %v623, %v1044
        %v1046 = vpop.f32.mrb[0].mxu0
        %v1047 = vadd.f32 %v623, %v1046
        %1048 = vmatprep.mubr.f32.mxu0 0.0
        %1049 = vmatmul.mubr.f32.gmra.mrb[0].mxu0 %v701
        %v1050 = vpop.f32.mrb[0].mxu0
        %v1051 = vadd.f32 %v628, %v1050
        %v1052 = vpop.f32.mrb[0].mxu0
        %v1053 = vadd.f32 %v628, %v1052
        %1054 = vmatprep.mubr.f32.mxu0 0.0
        %1055 = vmatmul.mubr.f32.gmra.mrb[0].mxu0 %v704
        %v1056 = vpop.f32.mrb[0].mxu0
        %v1057 = vadd.f32 %v633, %v1056
        %v1058 = vpop.f32.mrb[0].mxu0
        %v1059 = vadd.f32 %v633, %v1058
        %1060 = vmatprep.mubr.f32.mxu0 0.0
        %1061 = vmatmul.mubr.f32.gmra.mrb[0].mxu0 %v707
        %v1062 = vpop.f32.mrb[0].mxu0
        %v1063 = vadd.f32 %v638, %v1062
        %v1064 = vpop.f32.mrb[0].mxu0
        %v1065 = vadd.f32 %v638, %v1064
        %1066 = vmatprep.mubr.f32.mxu0 0.0
        %1067 = vmatmul.mubr.f32.gmra.mrb[0].mxu0 %v710
        %v1068 = vpop.f32.mrb[0].mxu0
        %v1069 = vadd.f32 %v643, %v1068
        %v1070 = vpop.f32.mrb[0].mxu0
        %v1071 = vadd.f32 %v643, %v1070
        %1072 = vmatprep.mubr.f32.mxu0 0.0
        %1073 = vmatmul.mubr.f32.gmra.mrb[0].mxu0 %v713
        %v1074 = vpop.f32.mrb[0].mxu0
        %v1075 = vadd.f32 %v648, %v1074
        %v1076 = vpop.f32.mrb[0].mxu0
        %v1077 = vadd.f32 %v648, %v1076
        %1078 = vmatprep.mubr.f32.mxu0 0.0
        %1079 = vmatmul.mubr.f32.gmra.mrb[0].mxu0 %v716
        %v1080 = vpop.f32.mrb[0].mxu0
        %v1081 = vadd.f32 %v653, %v1080
        %v1082 = vpop.f32.mrb[0].mxu0
        %v1083 = vadd.f32 %v653, %v1082
        %1084 = vmatprep.mubr.f32.mxu0 0.0
        %1085 = vmatmul.mubr.f32.gmra.mrb[0].mxu0 %v719
        %v1086 = vpop.f32.mrb[0].mxu0
        %v1087 = vadd.f32 %v658, %v1086
        %v1088 = vpop.f32.mrb[0].mxu0
        %v1089 = vadd.f32 %v658, %v1088
        %1090 = vdwg.mxu0
        %v1091 = vmax.f32 %v794, 0.0
        %v1092 = vmax.f32 %v796, 0.0
        %v1093 = vmax.f32 %v979, 0.0
        %v1094 = vmax.f32 %v981, 0.0
        %v1095 = vmax.f32 %v800, 0.0
        %v1096 = vmax.f32 %v802, 0.0
        %v1097 = vmax.f32 %v985, 0.0
        %v1098 = vmax.f32 %v987, 0.0
        %v1099 = vmax.f32 %v806, 0.0
        %v1100 = vmax.f32 %v808, 0.0
        %v1101 = vmax.f32 %v991, 0.0
        %v1102 = vmax.f32 %v993, 0.0
        %v1103 = vld [vmem:[%s4] sm:$0xff]
        %v1104 = vld [vmem:[%s4 + $0x8] sm:$0xff]
        %v1105 = vld [vmem:[%s5] sm:$0xff]
        %v1106 = vld [vmem:[%s5 + $0x8] sm:$0xff]
        %1108 = vset.pattern.permute.xlu0 0
        %1109 = vperm.xlu0 %1108, %v1105
        %v1110 = vpop.permute.xlu0 %1109
        %1113 = vset.pattern.permute.xlu0 0
        %1114 = vperm.xlu0 %1113, %v1106
        %v1115 = vpop.permute.xlu0 %1114
        %vm1117 = vcmask 195584
        %v1119 = vsel %vm1117, %v1103, 0
        %v1122 = vsel %vm1117, %v1104, 0
        %1124 = vmatprep.subr.mxu0 %v1092
        %1125 = vmatpush1.msra.mxu0 %v1091
        %1126 = vmatprep.subr.mxu0 %v1096
        %1127 = vmatpush1.msra.mxu0 %v1095
        %1128 = vmatprep.subr.mxu0 %v1100
        %1129 = vmatpush1.msra.mxu0 %v1099
        %1130 = vmatprep.subr.mxu0 0.0
        %1131 = vmatpush1.msra.mxu0 0.0
        %1132 = vmatprep.subr.mxu0 0.0
        %1133 = vmatpush1.msra.mxu0 0.0
        %1134 = vmatprep.subr.mxu0 0.0
        %1135 = vmatpush1.msra.mxu0 0.0
        %1136 = vmatprep.subr.mxu0 0.0
        %1137 = vmatpush1.msra.mxu0 0.0
        %1138 = vmatprep.subr.mxu0 0.0
        %1139 = vmatpush1.msra.mxu0 0.0
        %1140 = vmatprep.subr.mxu0 0.0
        %1141 = vmatpush1.msra.mxu0 0.0
        %1142 = vmatprep.subr.mxu0 0.0
        %1143 = vmatpush1.msra.mxu0 0.0
        %1144 = vmatprep.subr.mxu0 0.0
        %1145 = vmatpush1.msra.mxu0 0.0
        %1146 = vmatprep.subr.mxu0 0.0
        %1147 = vmatpush1.msra.mxu0 0.0
        %1148 = vmatprep.subr.mxu0 0.0
        %1149 = vmatpush1.msra.mxu0 0.0
        %1150 = vmatprep.subr.mxu0 0.0
        %1151 = vmatpush1.msra.mxu0 0.0
        %1152 = vmatprep.subr.mxu0 0.0
        %1153 = vmatpush1.msra.mxu0 0.0
        %1154 = vmatprep.subr.mxu0 0.0
        %1155 = vmatpush1.msra.mxu0 0.0
        %1156 = vmatprep.subr.mxu0 0.0
        %1157 = vmatpush1.msra.mxu0 0.0
        %1158 = vmatprep.subr.mxu0 0.0
        %1159 = vmatpush1.msra.mxu0 0.0
        %1160 = vmatprep.subr.mxu0 0.0
        %1161 = vmatpush1.msra.mxu0 0.0
        %1162 = vmatprep.subr.mxu0 0.0
        %1163 = vmatpush1.msra.mxu0 0.0
        %1164 = vmatprep.subr.mxu0 0.0
        %1165 = vmatpush1.msra.mxu0 0.0
        %1166 = vmatprep.subr.mxu0 0.0
        %1167 = vmatpush1.msra.mxu0 0.0
        %1168 = vmatprep.subr.mxu0 0.0
        %1169 = vmatpush1.msra.mxu0 0.0
        %1170 = vmatprep.subr.mxu0 0.0
        %1171 = vmatpush1.msra.mxu0 0.0
        %1172 = vmatprep.subr.mxu0 0.0
        %1173 = vmatpush1.msra.mxu0 0.0
        %1174 = vmatprep.subr.mxu0 0.0
        %1175 = vmatpush1.msra.mxu0 0.0
        %1176 = vmatprep.subr.mxu0 0.0
        %1177 = vmatpush1.msra.mxu0 0.0
        %1178 = vmatprep.subr.mxu0 0.0
        %1179 = vmatpush1.msra.mxu0 0.0
        %1180 = vmatprep.subr.mxu0 0.0
        %1181 = vmatpush1.msra.mxu0 0.0
        %1182 = vmatprep.subr.mxu0 0.0
        %1183 = vmatpush1.msra.mxu0 0.0
        %1184 = vmatprep.subr.mxu0 0.0
        %1185 = vmatpush1.msra.mxu0 0.0
        %1186 = vmatprep.subr.mxu0 0.0
        %1187 = vmatpush1.msra.mxu0 0.0
        %1188 = vmatprep.mubr.f32.mxu0 0.0
        %1189 = vmatmul.mubr.f32.gmra.mrb[0].mxu0 %v1119
        %v1190 = vpop.f32.mrb[0].mxu0
        %v1191 = vadd.f32 %v1110, %v1190
        %v1192 = vpop.f32.mrb[0].mxu0
        %v1193 = vadd.f32 %v1110, %v1192
        %1194 = vmatprep.mubr.f32.mxu0 0.0
        %1195 = vmatmul.mubr.f32.gmra.mrb[0].mxu0 %v1122
        %v1196 = vpop.f32.mrb[0].mxu0
        %v1197 = vadd.f32 %v1115, %v1196
        %v1198 = vpop.f32.mrb[0].mxu0
        %v1199 = vadd.f32 %v1115, %v1198
        %1200 = vdwg.mxu0
        %1201 = vmatprep.subr.mxu0 %v1094
        %1202 = vmatpush1.msra.mxu0 %v1093
        %1203 = vmatprep.subr.mxu0 %v1098
        %1204 = vmatpush1.msra.mxu0 %v1097
        %1205 = vmatprep.subr.mxu0 %v1102
        %1206 = vmatpush1.msra.mxu0 %v1101
        %1207 = vmatprep.subr.mxu0 0.0
        %1208 = vmatpush1.msra.mxu0 0.0
        %1209 = vmatprep.subr.mxu0 0.0
        %1210 = vmatpush1.msra.mxu0 0.0
        %1211 = vmatprep.subr.mxu0 0.0
        %1212 = vmatpush1.msra.mxu0 0.0
        %1213 = vmatprep.subr.mxu0 0.0
        %1214 = vmatpush1.msra.mxu0 0.0
        %1215 = vmatprep.subr.mxu0 0.0
        %1216 = vmatpush1.msra.mxu0 0.0
        %1217 = vmatprep.subr.mxu0 0.0
        %1218 = vmatpush1.msra.mxu0 0.0
        %1219 = vmatprep.subr.mxu0 0.0
        %1220 = vmatpush1.msra.mxu0 0.0
        %1221 = vmatprep.subr.mxu0 0.0
        %1222 = vmatpush1.msra.mxu0 0.0
        %1223 = vmatprep.subr.mxu0 0.0
        %1224 = vmatpush1.msra.mxu0 0.0
        %1225 = vmatprep.subr.mxu0 0.0
        %1226 = vmatpush1.msra.mxu0 0.0
        %1227 = vmatprep.subr.mxu0 0.0
        %1228 = vmatpush1.msra.mxu0 0.0
        %1229 = vmatprep.subr.mxu0 0.0
        %1230 = vmatpush1.msra.mxu0 0.0
        %1231 = vmatprep.subr.mxu0 0.0
        %1232 = vmatpush1.msra.mxu0 0.0
        %1233 = vmatprep.subr.mxu0 0.0
        %1234 = vmatpush1.msra.mxu0 0.0
        %1235 = vmatprep.subr.mxu0 0.0
        %1236 = vmatpush1.msra.mxu0 0.0
        %1237 = vmatprep.subr.mxu0 0.0
        %1238 = vmatpush1.msra.mxu0 0.0
        %1239 = vmatprep.subr.mxu0 0.0
        %1240 = vmatpush1.msra.mxu0 0.0
        %1241 = vmatprep.subr.mxu0 0.0
        %1242 = vmatpush1.msra.mxu0 0.0
        %1243 = vmatprep.subr.mxu0 0.0
        %1244 = vmatpush1.msra.mxu0 0.0
        %1245 = vmatprep.subr.mxu0 0.0
        %1246 = vmatpush1.msra.mxu0 0.0
        %1247 = vmatprep.subr.mxu0 0.0
        %1248 = vmatpush1.msra.mxu0 0.0
        %1249 = vmatprep.subr.mxu0 0.0
        %1250 = vmatpush1.msra.mxu0 0.0
        %1251 = vmatprep.subr.mxu0 0.0
        %1252 = vmatpush1.msra.mxu0 0.0
        %1253 = vmatprep.subr.mxu0 0.0
        %1254 = vmatpush1.msra.mxu0 0.0
        %1255 = vmatprep.subr.mxu0 0.0
        %1256 = vmatpush1.msra.mxu0 0.0
        %1257 = vmatprep.subr.mxu0 0.0
        %1258 = vmatpush1.msra.mxu0 0.0
        %1259 = vmatprep.subr.mxu0 0.0
        %1260 = vmatpush1.msra.mxu0 0.0
        %1261 = vmatprep.subr.mxu0 0.0
        %1262 = vmatpush1.msra.mxu0 0.0
        %1263 = vmatprep.subr.mxu0 0.0
        %1264 = vmatpush1.msra.mxu0 0.0
        %1265 = vmatprep.mubr.f32.mxu0 0.0
        %1266 = vmatmul.mubr.f32.gmra.mrb[0].mxu0 %v1119
        %v1267 = vpop.f32.mrb[0].mxu0
        %v1268 = vadd.f32 %v1110, %v1267
        %v1269 = vpop.f32.mrb[0].mxu0
        %v1270 = vadd.f32 %v1110, %v1269
        %1271 = vmatprep.mubr.f32.mxu0 0.0
        %1272 = vmatmul.mubr.f32.gmra.mrb[0].mxu0 %v1122
        %v1273 = vpop.f32.mrb[0].mxu0
        %v1274 = vadd.f32 %v1115, %v1273
        %v1275 = vpop.f32.mrb[0].mxu0
        %v1276 = vadd.f32 %v1115, %v1275
        %1277 = vdwg.mxu0
        %v1278 = vtanh.pop %v1197
        %v1279 = vtanh.pop %v1199
        %v1280 = vtanh.pop %v1274
        %v1281 = vtanh.pop %v1276
        %v1282 = vsub.f32 0.0, %v1278
        %v1283 = vsub.f32 0.0, %v1279
        %v1284 = vsub.f32 0.0, %v1280
        %v1285 = vsub.f32 0.0, %v1281
        %v1286 = vmul.f32 %v1282, 1.442695
        %v1287 = vpow.pop %v1286
        %v1288 = vmul.f32 %v1283, 1.442695
        %v1289 = vpow.pop %v1288
        %v1290 = vmul.f32 %v1284, 1.442695
        %v1291 = vpow.pop %v1290
        %v1292 = vmul.f32 %v1285, 1.442695
        %v1293 = vpow.pop %v1292
        %vm1294 = vcmask 1042432
        %v1295 = vsel %vm1294, %v1278, 0.0
        %v1296 = vrot.slane %v1295, 4
        %v1297 = vadd.f32 %v1295, %v1296
        %v1298 = vrot.slane %v1297, 2
        %v1299 = vadd.f32 %v1297, %v1298
        %v1300 = vrot.slane %v1299, 1
        %v1301 = vadd.f32 %v1299, %v1300
        %v1302 = vsel %vm1294, %v1279, 0.0
        %v1303 = vrot.slane %v1302, 4
        %v1304 = vadd.f32 %v1302, %v1303
        %v1305 = vrot.slane %v1304, 2
        %v1306 = vadd.f32 %v1304, %v1305
        %v1307 = vrot.slane %v1306, 1
        %v1308 = vadd.f32 %v1306, %v1307
        %v1309 = vsel %vm1294, %v1280, 0.0
        %v1310 = vrot.slane %v1309, 4
        %v1311 = vadd.f32 %v1309, %v1310
        %v1312 = vrot.slane %v1311, 2
        %v1313 = vadd.f32 %v1311, %v1312
        %v1314 = vrot.slane %v1313, 1
        %v1315 = vadd.f32 %v1313, %v1314
        %v1316 = vsel %vm1294, %v1281, 0.0
        %v1317 = vrot.slane %v1316, 4
        %v1318 = vadd.f32 %v1316, %v1317
        %v1319 = vrot.slane %v1318, 2
        %v1320 = vadd.f32 %v1318, %v1319
        %v1321 = vrot.slane %v1320, 1
        %v1322 = vadd.f32 %v1320, %v1321
        %v1323 = vmul.f32 %v1301, 1.442695
        %v1324 = vpow.pop %v1323
        %v1325 = vmul.f32 %v1308, 1.442695
        %v1326 = vpow.pop %v1325
        %v1327 = vmul.f32 %v1315, 1.442695
        %v1328 = vpow.pop %v1327
        %v1329 = vmul.f32 %v1322, 1.442695
        %v1330 = vpow.pop %v1329
        %v1331 = vsub.f32 0.0, %v1191
        %v1332 = vsub.f32 0.0, %v1193
        %v1333 = vsub.f32 0.0, %v1268
        %v1334 = vsub.f32 0.0, %v1270
        %v1335 = vmul.f32 %v1331, %v1287
        %v1336 = vmul.f32 %v1332, %v1289
        %v1337 = vmul.f32 %v1333, %v1291
        %v1338 = vmul.f32 %v1334, %v1293
        %v1343 = vrot.slane %v1191, 7
        %v1344 = vrot.slane %v1193, 7
        %v1345 = vrot.slane %v1268, 7
        %v1346 = vrot.slane %v1270, 7
        %v1351 = vsub.f32 %v1335, %v1343
        %v1352 = vsub.f32 %v1336, %v1344
        %v1353 = vsub.f32 %v1337, %v1345
        %v1354 = vsub.f32 %v1338, %v1346
        %v1359 = vrot.slane %v1287, 7
        %v1360 = vrot.slane %v1289, 7
        %v1361 = vrot.slane %v1291, 7
        %v1362 = vrot.slane %v1293, 7
        %v1367 = vmul.f32 %v1351, %v1359
        %v1368 = vmul.f32 %v1352, %v1360
        %v1369 = vmul.f32 %v1353, %v1361
        %v1370 = vmul.f32 %v1354, %v1362
        %v1371 = vrot.slane %v1191, 6
        %v1372 = vrot.slane %v1193, 6
        %v1373 = vrot.slane %v1268, 6
        %v1374 = vrot.slane %v1270, 6
        %v1379 = vsub.f32 %v1367, %v1371
        %v1380 = vsub.f32 %v1368, %v1372
        %v1381 = vsub.f32 %v1369, %v1373
        %v1382 = vsub.f32 %v1370, %v1374
        %v1383 = vrot.slane %v1287, 6
        %v1384 = vrot.slane %v1289, 6
        %v1385 = vrot.slane %v1291, 6
        %v1386 = vrot.slane %v1293, 6
        %v1391 = vmul.f32 %v1379, %v1383
        %v1392 = vmul.f32 %v1380, %v1384
        %v1393 = vmul.f32 %v1381, %v1385
        %v1394 = vmul.f32 %v1382, %v1386
        %v1395 = vld [vmem:[%s6] sm:$0xff]
        %v1396 = vld [vmem:[%s6 + $0x8] sm:$0xff]
        %v1397 = vld [vmem:[%s6 + $0x10] sm:$0xff]
        %v1398 = vld [vmem:[%s6 + $0x18] sm:$0xff]
        %v1399 = vld [vmem:[%s6 + $0x20] sm:$0xff]
        %v1400 = vld [vmem:[%s6 + $0x28] sm:$0xff]
        %v1401 = vld [vmem:[%s6 + $0x30] sm:$0xff]
        %v1402 = vld [vmem:[%s6 + $0x38] sm:$0xff]
        %v1403 = vld [vmem:[%s6 + $0x40] sm:$0xff]
        %v1404 = vld [vmem:[%s6 + $0x48] sm:$0xff]
        %v1405 = vld [vmem:[%s6 + $0x50] sm:$0xff]
        %v1406 = vld [vmem:[%s6 + $0x58] sm:$0xff]
        %v1407 = vld [vmem:[%s6 + $0x60] sm:$0xff]
        %v1408 = vld [vmem:[%s6 + $0x68] sm:$0xff]
        %v1409 = vld [vmem:[%s6 + $0x70] sm:$0xff]
        %v1410 = vld [vmem:[%s6 + $0x78] sm:$0xff]
        %1412 = vset.pattern.permute.xlu0 0
        %1413 = vperm.xlu0 %1412, %v1395
        %v1414 = vpop.permute.xlu0 %1413
        %1417 = vset.pattern.permute.xlu0 0
        %1418 = vperm.xlu0 %1417, %v1396
        %v1419 = vpop.permute.xlu0 %1418
        %1422 = vset.pattern.permute.xlu0 0
        %1423 = vperm.xlu0 %1422, %v1397
        %v1424 = vpop.permute.xlu0 %1423
        %1427 = vset.pattern.permute.xlu0 0
        %1428 = vperm.xlu0 %1427, %v1398
        %v1429 = vpop.permute.xlu0 %1428
        %1432 = vset.pattern.permute.xlu0 0
        %1433 = vperm.xlu0 %1432, %v1399
        %v1434 = vpop.permute.xlu0 %1433
        %1437 = vset.pattern.permute.xlu0 0
        %1438 = vperm.xlu0 %1437, %v1400
        %v1439 = vpop.permute.xlu0 %1438
        %1442 = vset.pattern.permute.xlu0 0
        %1443 = vperm.xlu0 %1442, %v1401
        %v1444 = vpop.permute.xlu0 %1443
        %1447 = vset.pattern.permute.xlu0 0
        %1448 = vperm.xlu0 %1447, %v1402
        %v1449 = vpop.permute.xlu0 %1448
        %1452 = vset.pattern.permute.xlu0 0
        %1453 = vperm.xlu0 %1452, %v1403
        %v1454 = vpop.permute.xlu0 %1453
        %1457 = vset.pattern.permute.xlu0 0
        %1458 = vperm.xlu0 %1457, %v1404
        %v1459 = vpop.permute.xlu0 %1458
        %1462 = vset.pattern.permute.xlu0 0
        %1463 = vperm.xlu0 %1462, %v1405
        %v1464 = vpop.permute.xlu0 %1463
        %1467 = vset.pattern.permute.xlu0 0
        %1468 = vperm.xlu0 %1467, %v1406
        %v1469 = vpop.permute.xlu0 %1468
        %1472 = vset.pattern.permute.xlu0 0
        %1473 = vperm.xlu0 %1472, %v1407
        %v1474 = vpop.permute.xlu0 %1473
        %1477 = vset.pattern.permute.xlu0 0
        %1478 = vperm.xlu0 %1477, %v1408
        %v1479 = vpop.permute.xlu0 %1478
        %1482 = vset.pattern.permute.xlu0 0
        %1483 = vperm.xlu0 %1482, %v1409
        %v1484 = vpop.permute.xlu0 %1483
        %1487 = vset.pattern.permute.xlu0 0
        %1488 = vperm.xlu0 %1487, %v1410
        %v1489 = vpop.permute.xlu0 %1488
        %v1491 = vlaneseq
        %v1492 = vshrl.u32 %v1491, 7
        %v1493 = vsub.s32 2, %v1492
        %v1494 = vrot.slane %v1391, %v1493
        %v1495 = vlaneseq
        %v1496 = vshrl.u32 %v1495, 7
        %v1497 = vsub.s32 2, %v1496
        %v1498 = vrot.slane %v1392, %v1497
        %v1499 = vlaneseq
        %v1500 = vshrl.u32 %v1499, 7
        %v1501 = vsub.s32 2, %v1500
        %v1502 = vrot.slane %v1393, %v1501
        %v1503 = vlaneseq
        %v1504 = vshrl.u32 %v1503, 7
        %v1505 = vsub.s32 2, %v1504
        %v1506 = vrot.slane %v1394, %v1505
        %v1507 = vmul.f32 %v1414, %v1494
        %v1508 = vmul.f32 %v1414, %v1498
        %v1509 = vmul.f32 %v1414, %v1502
        %v1510 = vmul.f32 %v1414, %v1506
        %v1511 = vmul.f32 %v1419, %v1494
        %v1512 = vmul.f32 %v1419, %v1498
        %v1513 = vmul.f32 %v1419, %v1502
        %v1514 = vmul.f32 %v1419, %v1506
        %v1515 = vmul.f32 %v1424, %v1494
        %v1516 = vmul.f32 %v1424, %v1498
        %v1517 = vmul.f32 %v1424, %v1502
        %v1518 = vmul.f32 %v1424, %v1506
        %v1519 = vmul.f32 %v1429, %v1494
        %v1520 = vmul.f32 %v1429, %v1498
        %v1521 = vmul.f32 %v1429, %v1502
        %v1522 = vmul.f32 %v1429, %v1506
        %v1523 = vmul.f32 %v1434, %v1494
        %v1524 = vmul.f32 %v1434, %v1498
        %v1525 = vmul.f32 %v1434, %v1502
        %v1526 = vmul.f32 %v1434, %v1506
        %v1527 = vmul.f32 %v1439, %v1494
        %v1528 = vmul.f32 %v1439, %v1498
        %v1529 = vmul.f32 %v1439, %v1502
        %v1530 = vmul.f32 %v1439, %v1506
        %v1531 = vmul.f32 %v1444, %v1494
        %v1532 = vmul.f32 %v1444, %v1498
        %v1533 = vmul.f32 %v1444, %v1502
        %v1534 = vmul.f32 %v1444, %v1506
        %v1535 = vmul.f32 %v1449, %v1494
        %v1536 = vmul.f32 %v1449, %v1498
        %v1537 = vmul.f32 %v1449, %v1502
        %v1538 = vmul.f32 %v1449, %v1506
        %v1539 = vmul.f32 %v1454, %v1494
        %v1540 = vmul.f32 %v1454, %v1498
        %v1541 = vmul.f32 %v1454, %v1502
        %v1542 = vmul.f32 %v1454, %v1506
        %v1543 = vmul.f32 %v1459, %v1494
        %v1544 = vmul.f32 %v1459, %v1498
        %v1545 = vmul.f32 %v1459, %v1502
        %v1546 = vmul.f32 %v1459, %v1506
        %v1547 = vmul.f32 %v1464, %v1494
        %v1548 = vmul.f32 %v1464, %v1498
        %v1549 = vmul.f32 %v1464, %v1502
        %v1550 = vmul.f32 %v1464, %v1506
        %v1551 = vmul.f32 %v1469, %v1494
        %v1552 = vmul.f32 %v1469, %v1498
        %v1553 = vmul.f32 %v1469, %v1502
        %v1554 = vmul.f32 %v1469, %v1506
        %v1555 = vmul.f32 %v1474, %v1494
        %v1556 = vmul.f32 %v1474, %v1498
        %v1557 = vmul.f32 %v1474, %v1502
        %v1558 = vmul.f32 %v1474, %v1506
        %v1559 = vmul.f32 %v1479, %v1494
        %v1560 = vmul.f32 %v1479, %v1498
        %v1561 = vmul.f32 %v1479, %v1502
        %v1562 = vmul.f32 %v1479, %v1506
        %v1563 = vmul.f32 %v1484, %v1494
        %v1564 = vmul.f32 %v1484, %v1498
        %v1565 = vmul.f32 %v1484, %v1502
        %v1566 = vmul.f32 %v1484, %v1506
        %v1567 = vmul.f32 %v1489, %v1494
        %v1568 = vmul.f32 %v1489, %v1498
        %v1569 = vmul.f32 %v1489, %v1502
        %v1570 = vmul.f32 %v1489, %v1506
        %v1571 = vadd.f32 %v812, %v1507
        %v1572 = vadd.f32 %v814, %v1508
        %v1573 = vadd.f32 %v997, %v1509
        %v1574 = vadd.f32 %v999, %v1510
        %v1575 = vadd.f32 %v818, %v1511
        %v1576 = vadd.f32 %v820, %v1512
        %v1577 = vadd.f32 %v1003, %v1513
        %v1578 = vadd.f32 %v1005, %v1514
        %v1579 = vadd.f32 %v824, %v1515
        %v1580 = vadd.f32 %v826, %v1516
        %v1581 = vadd.f32 %v1009, %v1517
        %v1582 = vadd.f32 %v1011, %v1518
        %v1583 = vadd.f32 %v830, %v1519
        %v1584 = vadd.f32 %v832, %v1520
        %v1585 = vadd.f32 %v1015, %v1521
        %v1586 = vadd.f32 %v1017, %v1522
        %v1587 = vadd.f32 %v836, %v1523
        %v1588 = vadd.f32 %v838, %v1524
        %v1589 = vadd.f32 %v1021, %v1525
        %v1590 = vadd.f32 %v1023, %v1526
        %v1591 = vadd.f32 %v842, %v1527
        %v1592 = vadd.f32 %v844, %v1528
        %v1593 = vadd.f32 %v1027, %v1529
        %v1594 = vadd.f32 %v1029, %v1530
        %v1595 = vadd.f32 %v848, %v1531
        %v1596 = vadd.f32 %v850, %v1532
        %v1597 = vadd.f32 %v1033, %v1533
        %v1598 = vadd.f32 %v1035, %v1534
        %v1599 = vadd.f32 %v854, %v1535
        %v1600 = vadd.f32 %v856, %v1536
        %v1601 = vadd.f32 %v1039, %v1537
        %v1602 = vadd.f32 %v1041, %v1538
        %v1603 = vadd.f32 %v860, %v1539
        %v1604 = vadd.f32 %v862, %v1540
        %v1605 = vadd.f32 %v1045, %v1541
        %v1606 = vadd.f32 %v1047, %v1542
        %v1607 = vadd.f32 %v866, %v1543
        %v1608 = vadd.f32 %v868, %v1544
        %v1609 = vadd.f32 %v1051, %v1545
        %v1610 = vadd.f32 %v1053, %v1546
        %v1611 = vadd.f32 %v872, %v1547
        %v1612 = vadd.f32 %v874, %v1548
        %v1613 = vadd.f32 %v1057, %v1549
        %v1614 = vadd.f32 %v1059, %v1550
        %v1615 = vadd.f32 %v878, %v1551
        %v1616 = vadd.f32 %v880, %v1552
        %v1617 = vadd.f32 %v1063, %v1553
        %v1618 = vadd.f32 %v1065, %v1554
        %v1619 = vadd.f32 %v884, %v1555
        %v1620 = vadd.f32 %v886, %v1556
        %v1621 = vadd.f32 %v1069, %v1557
        %v1622 = vadd.f32 %v1071, %v1558
        %v1623 = vadd.f32 %v890, %v1559
        %v1624 = vadd.f32 %v892, %v1560
        %v1625 = vadd.f32 %v1075, %v1561
        %v1626 = vadd.f32 %v1077, %v1562
        %v1627 = vadd.f32 %v896, %v1563
        %v1628 = vadd.f32 %v898, %v1564
        %v1629 = vadd.f32 %v1081, %v1565
        %v1630 = vadd.f32 %v1083, %v1566
        %v1631 = vadd.f32 %v902, %v1567
        %v1632 = vadd.f32 %v904, %v1568
        %v1633 = vadd.f32 %v1087, %v1569
        %v1634 = vadd.f32 %v1089, %v1570
        %v1635 = vmax.f32 %v1571, 0.0
        %v1636 = vmax.f32 %v1572, 0.0
        %v1637 = vmax.f32 %v1573, 0.0
        %v1638 = vmax.f32 %v1574, 0.0
        %v1639 = vmax.f32 %v1575, 0.0
        %v1640 = vmax.f32 %v1576, 0.0
        %v1641 = vmax.f32 %v1577, 0.0
        %v1642 = vmax.f32 %v1578, 0.0
        %v1643 = vmax.f32 %v1579, 0.0
        %v1644 = vmax.f32 %v1580, 0.0
        %v1645 = vmax.f32 %v1581, 0.0
        %v1646 = vmax.f32 %v1582, 0.0
        %v1647 = vmax.f32 %v1583, 0.0
        %v1648 = vmax.f32 %v1584, 0.0
        %v1649 = vmax.f32 %v1585, 0.0
        %v1650 = vmax.f32 %v1586, 0.0
        %v1651 = vmax.f32 %v1587, 0.0
        %v1652 = vmax.f32 %v1588, 0.0
        %v1653 = vmax.f32 %v1589, 0.0
        %v1654 = vmax.f32 %v1590, 0.0
        %v1655 = vmax.f32 %v1591, 0.0
        %v1656 = vmax.f32 %v1592, 0.0
        %v1657 = vmax.f32 %v1593, 0.0
        %v1658 = vmax.f32 %v1594, 0.0
        %v1659 = vmax.f32 %v1595, 0.0
        %v1660 = vmax.f32 %v1596, 0.0
        %v1661 = vmax.f32 %v1597, 0.0
        %v1662 = vmax.f32 %v1598, 0.0
        %v1663 = vmax.f32 %v1599, 0.0
        %v1664 = vmax.f32 %v1600, 0.0
        %v1665 = vmax.f32 %v1601, 0.0
        %v1666 = vmax.f32 %v1602, 0.0
        %v1667 = vmax.f32 %v1603, 0.0
        %v1668 = vmax.f32 %v1604, 0.0
        %v1669 = vmax.f32 %v1605, 0.0
        %v1670 = vmax.f32 %v1606, 0.0
        %v1671 = vmax.f32 %v1607, 0.0
        %v1672 = vmax.f32 %v1608, 0.0
        %v1673 = vmax.f32 %v1609, 0.0
        %v1674 = vmax.f32 %v1610, 0.0
        %v1675 = vmax.f32 %v1611, 0.0
        %v1676 = vmax.f32 %v1612, 0.0
        %v1677 = vmax.f32 %v1613, 0.0
        %v1678 = vmax.f32 %v1614, 0.0
        %v1679 = vmax.f32 %v1615, 0.0
        %v1680 = vmax.f32 %v1616, 0.0
        %v1681 = vmax.f32 %v1617, 0.0
        %v1682 = vmax.f32 %v1618, 0.0
        %v1683 = vmax.f32 %v1619, 0.0
        %v1684 = vmax.f32 %v1620, 0.0
        %v1685 = vmax.f32 %v1621, 0.0
        %v1686 = vmax.f32 %v1622, 0.0
        %v1687 = vmax.f32 %v1623, 0.0
        %v1688 = vmax.f32 %v1624, 0.0
        %v1689 = vmax.f32 %v1625, 0.0
        %v1690 = vmax.f32 %v1626, 0.0
        %v1691 = vmax.f32 %v1627, 0.0
        %v1692 = vmax.f32 %v1628, 0.0
        %v1693 = vmax.f32 %v1629, 0.0
        %v1694 = vmax.f32 %v1630, 0.0
        %v1695 = vmax.f32 %v1631, 0.0
        %v1696 = vmax.f32 %v1632, 0.0
        %v1697 = vmax.f32 %v1633, 0.0
        %v1698 = vmax.f32 %v1634, 0.0
        %v1699 = vld [vmem:[%s7] sm:$0xf]
        %v1700 = vld [vmem:[%s8] sm:$0xf]
        %1702 = vset.pattern.permute.xlu0 0
        %1703 = vperm.xlu0 %1702, %v1700
        %v1704 = vpop.permute.xlu0 %1703
        %1706 = vmatprep.subr.mxu0 %v1636
        %1707 = vmatpush1.msra.mxu0 %v1635
        %1708 = vmatprep.subr.mxu0 %v1640
        %1709 = vmatpush1.msra.mxu0 %v1639
        %1710 = vmatprep.subr.mxu0 %v1644
        %1711 = vmatpush1.msra.mxu0 %v1643
        %1712 = vmatprep.subr.mxu0 %v1648
        %1713 = vmatpush1.msra.mxu0 %v1647
        %1714 = vmatprep.subr.mxu0 %v1652
        %1715 = vmatpush1.msra.mxu0 %v1651
        %1716 = vmatprep.subr.mxu0 %v1656
        %1717 = vmatpush1.msra.mxu0 %v1655
        %1718 = vmatprep.subr.mxu0 %v1660
        %1719 = vmatpush1.msra.mxu0 %v1659
        %1720 = vmatprep.subr.mxu0 %v1664
        %1721 = vmatpush1.msra.mxu0 %v1663
        %1722 = vmatprep.subr.mxu0 %v1668
        %1723 = vmatpush1.msra.mxu0 %v1667
        %1724 = vmatprep.subr.mxu0 %v1672
        %1725 = vmatpush1.msra.mxu0 %v1671
        %1726 = vmatprep.subr.mxu0 %v1676
        %1727 = vmatpush1.msra.mxu0 %v1675
        %1728 = vmatprep.subr.mxu0 %v1680
        %1729 = vmatpush1.msra.mxu0 %v1679
        %1730 = vmatprep.subr.mxu0 %v1684
        %1731 = vmatpush1.msra.mxu0 %v1683
        %1732 = vmatprep.subr.mxu0 %v1688
        %1733 = vmatpush1.msra.mxu0 %v1687
        %1734 = vmatprep.subr.mxu0 %v1692
        %1735 = vmatpush1.msra.mxu0 %v1691
        %1736 = vmatprep.subr.mxu0 %v1696
        %1737 = vmatpush1.msra.mxu0 %v1695
        %1738 = vmatprep.subr.mxu0 0.0
        %1739 = vmatpush1.msra.mxu0 0.0
        %1740 = vmatprep.subr.mxu0 0.0
        %1741 = vmatpush1.msra.mxu0 0.0
        %1742 = vmatprep.subr.mxu0 0.0
        %1743 = vmatpush1.msra.mxu0 0.0
        %1744 = vmatprep.subr.mxu0 0.0
        %1745 = vmatpush1.msra.mxu0 0.0
        %1746 = vmatprep.subr.mxu0 0.0
        %1747 = vmatpush1.msra.mxu0 0.0
        %1748 = vmatprep.subr.mxu0 0.0
        %1749 = vmatpush1.msra.mxu0 0.0
        %1750 = vmatprep.subr.mxu0 0.0
        %1751 = vmatpush1.msra.mxu0 0.0
        %1752 = vmatprep.subr.mxu0 0.0
        %1753 = vmatpush1.msra.mxu0 0.0
        %1754 = vmatprep.subr.mxu0 0.0
        %1755 = vmatpush1.msra.mxu0 0.0
        %1756 = vmatprep.subr.mxu0 0.0
        %1757 = vmatpush1.msra.mxu0 0.0
        %1758 = vmatprep.subr.mxu0 0.0
        %1759 = vmatpush1.msra.mxu0 0.0
        %1760 = vmatprep.subr.mxu0 0.0
        %1761 = vmatpush1.msra.mxu0 0.0
        %1762 = vmatprep.subr.mxu0 0.0
        %1763 = vmatpush1.msra.mxu0 0.0
        %1764 = vmatprep.subr.mxu0 0.0
        %1765 = vmatpush1.msra.mxu0 0.0
        %1766 = vmatprep.subr.mxu0 0.0
        %1767 = vmatpush1.msra.mxu0 0.0
        %1768 = vmatprep.subr.mxu0 0.0
        %1769 = vmatpush1.msra.mxu0 0.0
        %1770 = vmatprep.mubr.f32.mxu0 0.0
        %1771 = vmatmul.mubr.f32.gmra.mrb[0].mxu0 %v1699
        %v1772 = vpop.f32.mrb[0].mxu0
        %v1773 = vadd.f32 %v1704, %v1772
        %v1774 = vpop.f32.mrb[0].mxu0
        %v1775 = vadd.f32 %v1704, %v1774
        %1776 = vdwg.mxu0
        %1777 = vmatprep.subr.mxu0 %v1638
        %1778 = vmatpush1.msra.mxu0 %v1637
        %1779 = vmatprep.subr.mxu0 %v1642
        %1780 = vmatpush1.msra.mxu0 %v1641
        %1781 = vmatprep.subr.mxu0 %v1646
        %1782 = vmatpush1.msra.mxu0 %v1645
        %1783 = vmatprep.subr.mxu0 %v1650
        %1784 = vmatpush1.msra.mxu0 %v1649
        %1785 = vmatprep.subr.mxu0 %v1654
        %1786 = vmatpush1.msra.mxu0 %v1653
        %1787 = vmatprep.subr.mxu0 %v1658
        %1788 = vmatpush1.msra.mxu0 %v1657
        %1789 = vmatprep.subr.mxu0 %v1662
        %1790 = vmatpush1.msra.mxu0 %v1661
        %1791 = vmatprep.subr.mxu0 %v1666
        %1792 = vmatpush1.msra.mxu0 %v1665
        %1793 = vmatprep.subr.mxu0 %v1670
        %1794 = vmatpush1.msra.mxu0 %v1669
        %1795 = vmatprep.subr.mxu0 %v1674
        %1796 = vmatpush1.msra.mxu0 %v1673
        %1797 = vmatprep.subr.mxu0 %v1678
        %1798 = vmatpush1.msra.mxu0 %v1677
        %1799 = vmatprep.subr.mxu0 %v1682
        %1800 = vmatpush1.msra.mxu0 %v1681
        %1801 = vmatprep.subr.mxu0 %v1686
        %1802 = vmatpush1.msra.mxu0 %v1685
        %1803 = vmatprep.subr.mxu0 %v1690
        %1804 = vmatpush1.msra.mxu0 %v1689
        %1805 = vmatprep.subr.mxu0 %v1694
        %1806 = vmatpush1.msra.mxu0 %v1693
        %1807 = vmatprep.subr.mxu0 %v1698
        %1808 = vmatpush1.msra.mxu0 %v1697
        %1809 = vmatprep.subr.mxu0 0.0
        %1810 = vmatpush1.msra.mxu0 0.0
        %1811 = vmatprep.subr.mxu0 0.0
        %1812 = vmatpush1.msra.mxu0 0.0
        %1813 = vmatprep.subr.mxu0 0.0
        %1814 = vmatpush1.msra.mxu0 0.0
        %1815 = vmatprep.subr.mxu0 0.0
        %1816 = vmatpush1.msra.mxu0 0.0
        %1817 = vmatprep.subr.mxu0 0.0
        %1818 = vmatpush1.msra.mxu0 0.0
        %1819 = vmatprep.subr.mxu0 0.0
        %1820 = vmatpush1.msra.mxu0 0.0
        %1821 = vmatprep.subr.mxu0 0.0
        %1822 = vmatpush1.msra.mxu0 0.0
        %1823 = vmatprep.subr.mxu0 0.0
        %1824 = vmatpush1.msra.mxu0 0.0
        %1825 = vmatprep.subr.mxu0 0.0
        %1826 = vmatpush1.msra.mxu0 0.0
        %1827 = vmatprep.subr.mxu0 0.0
        %1828 = vmatpush1.msra.mxu0 0.0
        %1829 = vmatprep.subr.mxu0 0.0
        %1830 = vmatpush1.msra.mxu0 0.0
        %1831 = vmatprep.subr.mxu0 0.0
        %1832 = vmatpush1.msra.mxu0 0.0
        %1833 = vmatprep.subr.mxu0 0.0
        %1834 = vmatpush1.msra.mxu0 0.0
        %1835 = vmatprep.subr.mxu0 0.0
        %1836 = vmatpush1.msra.mxu0 0.0
        %1837 = vmatprep.subr.mxu0 0.0
        %1838 = vmatpush1.msra.mxu0 0.0
        %1839 = vmatprep.subr.mxu0 0.0
        %1840 = vmatpush1.msra.mxu0 0.0
        %1841 = vmatprep.mubr.f32.mxu0 0.0
        %1842 = vmatmul.mubr.f32.gmra.mrb[0].mxu0 %v1699
        %v1843 = vpop.f32.mrb[0].mxu0
        %v1844 = vadd.f32 %v1704, %v1843
        %v1845 = vpop.f32.mrb[0].mxu0
        %v1846 = vadd.f32 %v1704, %v1845
        %1847 = vdwg.mxu0
        %vm1848 = vcmask 1043456
        %v1849 = vsel %vm1848, %v1773, 0.0
        %v1850 = vrot.slane %v1849, 4
        %v1851 = vadd.f32 %v1849, %v1850
        %v1852 = vrot.slane %v1851, 2
        %v1853 = vadd.f32 %v1851, %v1852
        %v1854 = vrot.slane %v1853, 1
        %v1855 = vadd.f32 %v1853, %v1854
        %v1856 = vsel %vm1848, %v1775, 0.0
        %v1857 = vrot.slane %v1856, 4
        %v1858 = vadd.f32 %v1856, %v1857
        %v1859 = vrot.slane %v1858, 2
        %v1860 = vadd.f32 %v1858, %v1859
        %v1861 = vrot.slane %v1860, 1
        %v1862 = vadd.f32 %v1860, %v1861
        %v1863 = vsel %vm1848, %v1844, 0.0
        %v1864 = vrot.slane %v1863, 4
        %v1865 = vadd.f32 %v1863, %v1864
        %v1866 = vrot.slane %v1865, 2
        %v1867 = vadd.f32 %v1865, %v1866
        %v1868 = vrot.slane %v1867, 1
        %v1869 = vadd.f32 %v1867, %v1868
        %v1870 = vsel %vm1848, %v1846, 0.0
        %v1871 = vrot.slane %v1870, 4
        %v1872 = vadd.f32 %v1870, %v1871
        %v1873 = vrot.slane %v1872, 2
        %v1874 = vadd.f32 %v1872, %v1873
        %v1875 = vrot.slane %v1874, 1
        %v1876 = vadd.f32 %v1874, %v1875
        %v1877 = vrcp.pop 4.0
        %v1878 = vmul.f32 %v1855, %v1877
        %v1879 = vmul.f32 %v1862, %v1877
        %v1880 = vmul.f32 %v1869, %v1877
        %v1881 = vmul.f32 %v1876, %v1877
        %v1882 = vsub.f32 %v1773, %v1878
        %v1883 = vsub.f32 %v1775, %v1879
        %v1884 = vsub.f32 %v1844, %v1880
        %v1885 = vsub.f32 %v1846, %v1881
        %v1886 = vmul.f32 %v1882, %v1882
        %v1887 = vmul.f32 %v1883, %v1883
        %v1888 = vmul.f32 %v1884, %v1884
        %v1889 = vmul.f32 %v1885, %v1885
        %v1890 = vsel %vm1848, %v1886, 0.0
        %v1891 = vrot.slane %v1890, 4
        %v1892 = vadd.f32 %v1890, %v1891
        %v1893 = vrot.slane %v1892, 2
        %v1894 = vadd.f32 %v1892, %v1893
        %v1895 = vrot.slane %v1894, 1
        %v1896 = vadd.f32 %v1894, %v1895
        %v1897 = vsel %vm1848, %v1887, 0.0
        %v1898 = vrot.slane %v1897, 4
        %v1899 = vadd.f32 %v1897, %v1898
        %v1900 = vrot.slane %v1899, 2
        %v1901 = vadd.f32 %v1899, %v1900
        %v1902 = vrot.slane %v1901, 1
        %v1903 = vadd.f32 %v1901, %v1902
        %v1904 = vsel %vm1848, %v1888, 0.0
        %v1905 = vrot.slane %v1904, 4
        %v1906 = vadd.f32 %v1904, %v1905
        %v1907 = vrot.slane %v1906, 2
        %v1908 = vadd.f32 %v1906, %v1907
        %v1909 = vrot.slane %v1908, 1
        %v1910 = vadd.f32 %v1908, %v1909
        %v1911 = vsel %vm1848, %v1889, 0.0
        %v1912 = vrot.slane %v1911, 4
        %v1913 = vadd.f32 %v1911, %v1912
        %v1914 = vrot.slane %v1913, 2
        %v1915 = vadd.f32 %v1913, %v1914
        %v1916 = vrot.slane %v1915, 1
        %v1917 = vadd.f32 %v1915, %v1916
        %v1918 = vrcp.pop 3.0
        %v1919 = vmul.f32 %v1896, %v1918
        %v1920 = vmul.f32 %v1903, %v1918
        %v1921 = vmul.f32 %v1910, %v1918
        %v1922 = vmul.f32 %v1917, %v1918
        %v1923 = vrsqrt.pop %v1919
        %v1924 = vmul.f32 %v1919, %v1923
        %vm1925 = vcmp.eq.f32.partialorder %v1919, inf
        %v1926 = vsel %vm1925, %v1919, %v1924
        %vm1927 = vcmp.eq.f32.partialorder %v1919, 0.0
        %v1928 = vand.u32 %v1919, 2147483648
        %v1929 = vsel %vm1927, %v1928, %v1926
        %v1930 = vrsqrt.pop %v1920
        %v1931 = vmul.f32 %v1920, %v1930
        %vm1932 = vcmp.eq.f32.partialorder %v1920, inf
        %v1933 = vsel %vm1932, %v1920, %v1931
        %vm1934 = vcmp.eq.f32.partialorder %v1920, 0.0
        %v1935 = vand.u32 %v1920, 2147483648
        %v1936 = vsel %vm1934, %v1935, %v1933
        %v1937 = vrsqrt.pop %v1921
        %v1938 = vmul.f32 %v1921, %v1937
        %vm1939 = vcmp.eq.f32.partialorder %v1921, inf
        %v1940 = vsel %vm1939, %v1921, %v1938
        %vm1941 = vcmp.eq.f32.partialorder %v1921, 0.0
        %v1942 = vand.u32 %v1921, 2147483648
        %v1943 = vsel %vm1941, %v1942, %v1940
        %v1944 = vrsqrt.pop %v1922
        %v1945 = vmul.f32 %v1922, %v1944
        %vm1946 = vcmp.eq.f32.partialorder %v1922, inf
        %v1947 = vsel %vm1946, %v1922, %v1945
        %vm1948 = vcmp.eq.f32.partialorder %v1922, 0.0
        %v1949 = vand.u32 %v1922, 2147483648
        %v1950 = vsel %vm1948, %v1949, %v1947
        %v1951 = vtanh.pop %v788
        %v1952 = vtanh.pop %v790
        %v1953 = vtanh.pop %v973
        %v1954 = vtanh.pop %v975
        %v1955 = vmul.f32 %v1951, 1.442695
        %v1956 = vpow.pop %v1955
        %v1957 = vmul.f32 %v1952, 1.442695
        %v1958 = vpow.pop %v1957
        %v1959 = vmul.f32 %v1953, 1.442695
        %v1960 = vpow.pop %v1959
        %v1961 = vmul.f32 %v1954, 1.442695
        %v1962 = vpow.pop %v1961
        %v1963 = vld [vmem:[%s467] sm:$0xff]
        %v1964 = vld [vmem:[%s467 + $0x8] sm:$0xff]
        %v1965 = vld [vmem:[%s467 + $0x10] sm:$0xff]
        %v1966 = vld [vmem:[%s467 + $0x18] sm:$0xff]
        %v1967 = vld [vmem:[%s467 + $0x20] sm:$0xff]
        %v1968 = vld [vmem:[%s467 + $0x28] sm:$0xff]
        %v1969 = vld [vmem:[%s467 + $0x30] sm:$0xff]
        %v1970 = vld [vmem:[%s467 + $0x38] sm:$0xff]
        %v1971 = vld [vmem:[%s467 + $0x40] sm:$0xff]
        %v1972 = vld [vmem:[%s467 + $0x48] sm:$0xff]
        %v1973 = vld [vmem:[%s467 + $0x50] sm:$0xff]
        %v1974 = vld [vmem:[%s467 + $0x58] sm:$0xff]
        %v1975 = vld [vmem:[%s467 + $0x60] sm:$0xff]
        %v1976 = vld [vmem:[%s467 + $0x68] sm:$0xff]
        %v1977 = vld [vmem:[%s467 + $0x70] sm:$0xff]
        %v1978 = vld [vmem:[%s467 + $0x78] sm:$0xff]
        %v1979 = vld [vmem:[%s467 + $0x80] sm:$0xff]
        %v1980 = vld [vmem:[%s467 + $0x88] sm:$0xff]
        %v1981 = vld [vmem:[%s467 + $0x90] sm:$0xff]
        %v1982 = vld [vmem:[%s467 + $0x98] sm:$0xff]
        %v1983 = vld [vmem:[%s467 + $0xa0] sm:$0xff]
        %v1984 = vld [vmem:[%s467 + $0xa8] sm:$0xff]
        %v1985 = vld [vmem:[%s467 + $0xb0] sm:$0xff]
        %v1986 = vld [vmem:[%s467 + $0xb8] sm:$0xff]
        %v1987 = vld [vmem:[%s467 + $0xc0] sm:$0xff]
        %v1988 = vld [vmem:[%s467 + $0xc8] sm:$0xff]
        %v1989 = vld [vmem:[%s467 + $0xd0] sm:$0xff]
        %v1990 = vld [vmem:[%s467 + $0xd8] sm:$0xff]
        %v1991 = vld [vmem:[%s467 + $0xe0] sm:$0xff]
        %v1992 = vld [vmem:[%s467 + $0xe8] sm:$0xff]
        %v1993 = vld [vmem:[%s467 + $0xf0] sm:$0xff]
        %v1994 = vld [vmem:[%s467 + $0xf8] sm:$0xff]
        %v1995 = vld [vmem:[%s467 + $0x100] sm:$0xff]
        %v1996 = vld [vmem:[%s467 + $0x108] sm:$0xff]
        %v1997 = vld [vmem:[%s467 + $0x110] sm:$0xff]
        %v1998 = vld [vmem:[%s467 + $0x118] sm:$0xff]
        %v1999 = vld [vmem:[%s467 + $0x120] sm:$0xff]
        %v2000 = vld [vmem:[%s467 + $0x128] sm:$0xff]
        %v2001 = vld [vmem:[%s467 + $0x130] sm:$0xff]
        %v2002 = vld [vmem:[%s467 + $0x138] sm:$0xff]
        %v2003 = vld [vmem:[%s467 + $0x140] sm:$0xff]
        %v2004 = vld [vmem:[%s467 + $0x148] sm:$0xff]
        %v2005 = vld [vmem:[%s467 + $0x150] sm:$0xff]
        %v2006 = vld [vmem:[%s467 + $0x158] sm:$0xff]
        %v2007 = vld [vmem:[%s467 + $0x160] sm:$0xff]
        %v2008 = vld [vmem:[%s467 + $0x168] sm:$0xff]
        %v2009 = vld [vmem:[%s467 + $0x170] sm:$0xff]
        %v2010 = vld [vmem:[%s467 + $0x178] sm:$0xff]
        %v2011 = vld [vmem:[%s467 + $0x180] sm:$0xff]
        %v2012 = vld [vmem:[%s467 + $0x188] sm:$0xff]
        %v2013 = vld [vmem:[%s467 + $0x190] sm:$0xff]
        %v2014 = vld [vmem:[%s467 + $0x198] sm:$0xff]
        %vm2015 = vcmask 850944
        %v2017 = vsel %vm2015, 1.0, 0
        %2019 = vmatprep.subr.mxu0 %v1964
        %2020 = vmatpush1.msra.mxu0 %v1963
        %2021 = vmatprep.subr.mxu0 %v1968
        %2022 = vmatpush1.msra.mxu0 %v1967
        %2023 = vmatprep.subr.mxu0 %v1972
        %2024 = vmatpush1.msra.mxu0 %v1971
        %2025 = vmatprep.subr.mxu0 %v1976
        %2026 = vmatpush1.msra.mxu0 %v1975
        %2027 = vmatprep.subr.mxu0 %v1980
        %2028 = vmatpush1.msra.mxu0 %v1979
        %2029 = vmatprep.subr.mxu0 %v1984
        %2030 = vmatpush1.msra.mxu0 %v1983
        %2031 = vmatprep.subr.mxu0 %v1988
        %2032 = vmatpush1.msra.mxu0 %v1987
        %2033 = vmatprep.subr.mxu0 %v1992
        %2034 = vmatpush1.msra.mxu0 %v1991
        %2035 = vmatprep.subr.mxu0 %v1996
        %2036 = vmatpush1.msra.mxu0 %v1995
        %2037 = vmatprep.subr.mxu0 %v2000
        %2038 = vmatpush1.msra.mxu0 %v1999
        %2039 = vmatprep.subr.mxu0 %v2004
        %2040 = vmatpush1.msra.mxu0 %v2003
        %2041 = vmatprep.subr.mxu0 %v2008
        %2042 = vmatpush1.msra.mxu0 %v2007
        %2043 = vmatprep.subr.mxu0 %v2012
        %2044 = vmatpush1.msra.mxu0 %v2011
        %2045 = vmatprep.subr.mxu0 0.0
        %2046 = vmatpush1.msra.mxu0 0.0
        %2047 = vmatprep.subr.mxu0 0.0
        %2048 = vmatpush1.msra.mxu0 0.0
        %2049 = vmatprep.subr.mxu0 0.0
        %2050 = vmatpush1.msra.mxu0 0.0
        %2051 = vmatprep.subr.mxu0 0.0
        %2052 = vmatpush1.msra.mxu0 0.0
        %2053 = vmatprep.subr.mxu0 0.0
        %2054 = vmatpush1.msra.mxu0 0.0
        %2055 = vmatprep.subr.mxu0 0.0
        %2056 = vmatpush1.msra.mxu0 0.0
        %2057 = vmatprep.subr.mxu0 0.0
        %2058 = vmatpush1.msra.mxu0 0.0
        %2059 = vmatprep.subr.mxu0 0.0
        %2060 = vmatpush1.msra.mxu0 0.0
        %2061 = vmatprep.subr.mxu0 0.0
        %2062 = vmatpush1.msra.mxu0 0.0
        %2063 = vmatprep.subr.mxu0 0.0
        %2064 = vmatpush1.msra.mxu0 0.0
        %2065 = vmatprep.subr.mxu0 0.0
        %2066 = vmatpush1.msra.mxu0 0.0
        %2067 = vmatprep.subr.mxu0 0.0
        %2068 = vmatpush1.msra.mxu0 0.0
        %2069 = vmatprep.subr.mxu0 0.0
        %2070 = vmatpush1.msra.mxu0 0.0
        %2071 = vmatprep.subr.mxu0 0.0
        %2072 = vmatpush1.msra.mxu0 0.0
        %2073 = vmatprep.subr.mxu0 0.0
        %2074 = vmatpush1.msra.mxu0 0.0
        %2075 = vmatprep.subr.mxu0 0.0
        %2076 = vmatpush1.msra.mxu0 0.0
        %2077 = vmatprep.subr.mxu0 0.0
        %2078 = vmatpush1.msra.mxu0 0.0
        %2079 = vmatprep.subr.mxu0 0.0
        %2080 = vmatpush1.msra.mxu0 0.0
        %2081 = vmatprep.subr.mxu0 0.0
        %2082 = vmatpush1.msra.mxu0 0.0
        %2083 = vmatprep.mubr.f32.mxu0 0.0
        %2084 = vmatmul.mubr.f32.gmra.mrb[0].mxu0 %v2017
        %v2085 = vpop.f32.mrb[0].mxu0
        %v2086 = vadd.f32 0.0, %v2085
        %v2087 = vpop.f32.mrb[0].mxu0
        %v2088 = vadd.f32 0.0, %v2087
        %2089 = vdwg.mxu0
        %2090 = vmatprep.subr.mxu0 %v1966
        %2091 = vmatpush1.msra.mxu0 %v1965
        %2092 = vmatprep.subr.mxu0 %v1970
        %2093 = vmatpush1.msra.mxu0 %v1969
        %2094 = vmatprep.subr.mxu0 %v1974
        %2095 = vmatpush1.msra.mxu0 %v1973
        %2096 = vmatprep.subr.mxu0 %v1978
        %2097 = vmatpush1.msra.mxu0 %v1977
        %2098 = vmatprep.subr.mxu0 %v1982
        %2099 = vmatpush1.msra.mxu0 %v1981
        %2100 = vmatprep.subr.mxu0 %v1986
        %2101 = vmatpush1.msra.mxu0 %v1985
        %2102 = vmatprep.subr.mxu0 %v1990
        %2103 = vmatpush1.msra.mxu0 %v1989
        %2104 = vmatprep.subr.mxu0 %v1994
        %2105 = vmatpush1.msra.mxu0 %v1993
        %2106 = vmatprep.subr.mxu0 %v1998
        %2107 = vmatpush1.msra.mxu0 %v1997
        %2108 = vmatprep.subr.mxu0 %v2002
        %2109 = vmatpush1.msra.mxu0 %v2001
        %2110 = vmatprep.subr.mxu0 %v2006
        %2111 = vmatpush1.msra.mxu0 %v2005
        %2112 = vmatprep.subr.mxu0 %v2010
        %2113 = vmatpush1.msra.mxu0 %v2009
        %2114 = vmatprep.subr.mxu0 %v2014
        %2115 = vmatpush1.msra.mxu0 %v2013
        %2116 = vmatprep.subr.mxu0 0.0
        %2117 = vmatpush1.msra.mxu0 0.0
        %2118 = vmatprep.subr.mxu0 0.0
        %2119 = vmatpush1.msra.mxu0 0.0
        %2120 = vmatprep.subr.mxu0 0.0
        %2121 = vmatpush1.msra.mxu0 0.0
        %2122 = vmatprep.subr.mxu0 0.0
        %2123 = vmatpush1.msra.mxu0 0.0
        %2124 = vmatprep.subr.mxu0 0.0
        %2125 = vmatpush1.msra.mxu0 0.0
        %2126 = vmatprep.subr.mxu0 0.0
        %2127 = vmatpush1.msra.mxu0 0.0
        %2128 = vmatprep.subr.mxu0 0.0
        %2129 = vmatpush1.msra.mxu0 0.0
        %2130 = vmatprep.subr.mxu0 0.0
        %2131 = vmatpush1.msra.mxu0 0.0
        %2132 = vmatprep.subr.mxu0 0.0
        %2133 = vmatpush1.msra.mxu0 0.0
        %2134 = vmatprep.subr.mxu0 0.0
        %2135 = vmatpush1.msra.mxu0 0.0
        %2136 = vmatprep.subr.mxu0 0.0
        %2137 = vmatpush1.msra.mxu0 0.0
        %2138 = vmatprep.subr.mxu0 0.0
        %2139 = vmatpush1.msra.mxu0 0.0
        %2140 = vmatprep.subr.mxu0 0.0
        %2141 = vmatpush1.msra.mxu0 0.0
        %2142 = vmatprep.subr.mxu0 0.0
        %2143 = vmatpush1.msra.mxu0 0.0
        %2144 = vmatprep.subr.mxu0 0.0
        %2145 = vmatpush1.msra.mxu0 0.0
        %2146 = vmatprep.subr.mxu0 0.0
        %2147 = vmatpush1.msra.mxu0 0.0
        %2148 = vmatprep.subr.mxu0 0.0
        %2149 = vmatpush1.msra.mxu0 0.0
        %2150 = vmatprep.subr.mxu0 0.0
        %2151 = vmatpush1.msra.mxu0 0.0
        %2152 = vmatprep.subr.mxu0 0.0
        %2153 = vmatpush1.msra.mxu0 0.0
        %2154 = vmatprep.mubr.f32.mxu0 0.0
        %2155 = vmatmul.mubr.f32.gmra.mrb[0].mxu0 %v2017
        %v2156 = vpop.f32.mrb[0].mxu0
        %v2157 = vadd.f32 0.0, %v2156
        %v2158 = vpop.f32.mrb[0].mxu0
        %v2159 = vadd.f32 0.0, %v2158
        %2160 = vdwg.mxu0
        %v2161 = vmul.f32 %v1963, %v1963
        %v2162 = vmul.f32 %v1964, %v1964
        %v2163 = vmul.f32 %v1965, %v1965
        %v2164 = vmul.f32 %v1966, %v1966
        %v2165 = vmul.f32 %v1967, %v1967
        %v2166 = vmul.f32 %v1968, %v1968
        %v2167 = vmul.f32 %v1969, %v1969
        %v2168 = vmul.f32 %v1970, %v1970
        %v2169 = vmul.f32 %v1971, %v1971
        %v2170 = vmul.f32 %v1972, %v1972
        %v2171 = vmul.f32 %v1973, %v1973
        %v2172 = vmul.f32 %v1974, %v1974
        %v2173 = vmul.f32 %v1975, %v1975
        %v2174 = vmul.f32 %v1976, %v1976
        %v2175 = vmul.f32 %v1977, %v1977
        %v2176 = vmul.f32 %v1978, %v1978
        %v2177 = vmul.f32 %v1979, %v1979
        %v2178 = vmul.f32 %v1980, %v1980
        %v2179 = vmul.f32 %v1981, %v1981
        %v2180 = vmul.f32 %v1982, %v1982
        %v2181 = vmul.f32 %v1983, %v1983
        %v2182 = vmul.f32 %v1984, %v1984
        %v2183 = vmul.f32 %v1985, %v1985
        %v2184 = vmul.f32 %v1986, %v1986
        %v2185 = vmul.f32 %v1987, %v1987
        %v2186 = vmul.f32 %v1988, %v1988
        %v2187 = vmul.f32 %v1989, %v1989
        %v2188 = vmul.f32 %v1990, %v1990
        %v2189 = vmul.f32 %v1991, %v1991
        %v2190 = vmul.f32 %v1992, %v1992
        %v2191 = vmul.f32 %v1993, %v1993
        %v2192 = vmul.f32 %v1994, %v1994
        %v2193 = vmul.f32 %v1995, %v1995
        %v2194 = vmul.f32 %v1996, %v1996
        %v2195 = vmul.f32 %v1997, %v1997
        %v2196 = vmul.f32 %v1998, %v1998
        %v2197 = vmul.f32 %v1999, %v1999
        %v2198 = vmul.f32 %v2000, %v2000
        %v2199 = vmul.f32 %v2001, %v2001
        %v2200 = vmul.f32 %v2002, %v2002
        %v2201 = vmul.f32 %v2003, %v2003
        %v2202 = vmul.f32 %v2004, %v2004
        %v2203 = vmul.f32 %v2005, %v2005
        %v2204 = vmul.f32 %v2006, %v2006
        %v2205 = vmul.f32 %v2007, %v2007
        %v2206 = vmul.f32 %v2008, %v2008
        %v2207 = vmul.f32 %v2009, %v2009
        %v2208 = vmul.f32 %v2010, %v2010
        %v2209 = vmul.f32 %v2011, %v2011
        %v2210 = vmul.f32 %v2012, %v2012
        %v2211 = vmul.f32 %v2013, %v2013
        %v2212 = vmul.f32 %v2014, %v2014
        %2213 = vmatprep.subr.mxu0 %v2162
        %2214 = vmatpush1.msra.mxu0 %v2161
        %2215 = vmatprep.subr.mxu0 %v2166
        %2216 = vmatpush1.msra.mxu0 %v2165
        %2217 = vmatprep.subr.mxu0 %v2170
        %2218 = vmatpush1.msra.mxu0 %v2169
        %2219 = vmatprep.subr.mxu0 %v2174
        %2220 = vmatpush1.msra.mxu0 %v2173
        %2221 = vmatprep.subr.mxu0 %v2178
        %2222 = vmatpush1.msra.mxu0 %v2177
        %2223 = vmatprep.subr.mxu0 %v2182
        %2224 = vmatpush1.msra.mxu0 %v2181
        %2225 = vmatprep.subr.mxu0 %v2186
        %2226 = vmatpush1.msra.mxu0 %v2185
        %2227 = vmatprep.subr.mxu0 %v2190
        %2228 = vmatpush1.msra.mxu0 %v2189
        %2229 = vmatprep.subr.mxu0 %v2194
        %2230 = vmatpush1.msra.mxu0 %v2193
        %2231 = vmatprep.subr.mxu0 %v2198
        %2232 = vmatpush1.msra.mxu0 %v2197
        %2233 = vmatprep.subr.mxu0 %v2202
        %2234 = vmatpush1.msra.mxu0 %v2201
        %2235 = vmatprep.subr.mxu0 %v2206
        %2236 = vmatpush1.msra.mxu0 %v2205
        %2237 = vmatprep.subr.mxu0 %v2210
        %2238 = vmatpush1.msra.mxu0 %v2209
        %2239 = vmatprep.subr.mxu0 0.0
        %2240 = vmatpush1.msra.mxu0 0.0
        %2241 = vmatprep.subr.mxu0 0.0
        %2242 = vmatpush1.msra.mxu0 0.0
        %2243 = vmatprep.subr.mxu0 0.0
        %2244 = vmatpush1.msra.mxu0 0.0
        %2245 = vmatprep.subr.mxu0 0.0
        %2246 = vmatpush1.msra.mxu0 0.0
        %2247 = vmatprep.subr.mxu0 0.0
        %2248 = vmatpush1.msra.mxu0 0.0
        %2249 = vmatprep.subr.mxu0 0.0
        %2250 = vmatpush1.msra.mxu0 0.0
        %2251 = vmatprep.subr.mxu0 0.0
        %2252 = vmatpush1.msra.mxu0 0.0
        %2253 = vmatprep.subr.mxu0 0.0
        %2254 = vmatpush1.msra.mxu0 0.0
        %2255 = vmatprep.subr.mxu0 0.0
        %2256 = vmatpush1.msra.mxu0 0.0
        %2257 = vmatprep.subr.mxu0 0.0
        %2258 = vmatpush1.msra.mxu0 0.0
        %2259 = vmatprep.subr.mxu0 0.0
        %2260 = vmatpush1.msra.mxu0 0.0
        %2261 = vmatprep.subr.mxu0 0.0
        %2262 = vmatpush1.msra.mxu0 0.0
        %2263 = vmatprep.subr.mxu0 0.0
        %2264 = vmatpush1.msra.mxu0 0.0
        %2265 = vmatprep.subr.mxu0 0.0
        %2266 = vmatpush1.msra.mxu0 0.0
        %2267 = vmatprep.subr.mxu0 0.0
        %2268 = vmatpush1.msra.mxu0 0.0
        %2269 = vmatprep.subr.mxu0 0.0
        %2270 = vmatpush1.msra.mxu0 0.0
        %2271 = vmatprep.subr.mxu0 0.0
        %2272 = vmatpush1.msra.mxu0 0.0
        %2273 = vmatprep.subr.mxu0 0.0
        %2274 = vmatpush1.msra.mxu0 0.0
        %2275 = vmatprep.subr.mxu0 0.0
        %2276 = vmatpush1.msra.mxu0 0.0
        %2277 = vmatprep.mubr.f32.mxu0 0.0
        %2278 = vmatmul.mubr.f32.gmra.mrb[0].mxu0 %v2017
        %v2279 = vpop.f32.mrb[0].mxu0
        %v2280 = vadd.f32 0.0, %v2279
        %v2281 = vpop.f32.mrb[0].mxu0
        %v2282 = vadd.f32 0.0, %v2281
        %2283 = vdwg.mxu0
        %2284 = vmatprep.subr.mxu0 %v2164
        %2285 = vmatpush1.msra.mxu0 %v2163
        %2286 = vmatprep.subr.mxu0 %v2168
        %2287 = vmatpush1.msra.mxu0 %v2167
        %2288 = vmatprep.subr.mxu0 %v2172
        %2289 = vmatpush1.msra.mxu0 %v2171
        %2290 = vmatprep.subr.mxu0 %v2176
        %2291 = vmatpush1.msra.mxu0 %v2175
        %2292 = vmatprep.subr.mxu0 %v2180
        %2293 = vmatpush1.msra.mxu0 %v2179
        %2294 = vmatprep.subr.mxu0 %v2184
        %2295 = vmatpush1.msra.mxu0 %v2183
        %2296 = vmatprep.subr.mxu0 %v2188
        %2297 = vmatpush1.msra.mxu0 %v2187
        %2298 = vmatprep.subr.mxu0 %v2192
        %2299 = vmatpush1.msra.mxu0 %v2191
        %2300 = vmatprep.subr.mxu0 %v2196
        %2301 = vmatpush1.msra.mxu0 %v2195
        %2302 = vmatprep.subr.mxu0 %v2200
        %2303 = vmatpush1.msra.mxu0 %v2199
        %2304 = vmatprep.subr.mxu0 %v2204
        %2305 = vmatpush1.msra.mxu0 %v2203
        %2306 = vmatprep.subr.mxu0 %v2208
        %2307 = vmatpush1.msra.mxu0 %v2207
        %2308 = vmatprep.subr.mxu0 %v2212
        %2309 = vmatpush1.msra.mxu0 %v2211
        %2310 = vmatprep.subr.mxu0 0.0
        %2311 = vmatpush1.msra.mxu0 0.0
        %2312 = vmatprep.subr.mxu0 0.0
        %2313 = vmatpush1.msra.mxu0 0.0
        %2314 = vmatprep.subr.mxu0 0.0
        %2315 = vmatpush1.msra.mxu0 0.0
        %2316 = vmatprep.subr.mxu0 0.0
        %2317 = vmatpush1.msra.mxu0 0.0
        %2318 = vmatprep.subr.mxu0 0.0
        %2319 = vmatpush1.msra.mxu0 0.0
        %2320 = vmatprep.subr.mxu0 0.0
        %2321 = vmatpush1.msra.mxu0 0.0
        %2322 = vmatprep.subr.mxu0 0.0
        %2323 = vmatpush1.msra.mxu0 0.0
        %2324 = vmatprep.subr.mxu0 0.0
        %2325 = vmatpush1.msra.mxu0 0.0
        %2326 = vmatprep.subr.mxu0 0.0
        %2327 = vmatpush1.msra.mxu0 0.0
        %2328 = vmatprep.subr.mxu0 0.0
        %2329 = vmatpush1.msra.mxu0 0.0
        %2330 = vmatprep.subr.mxu0 0.0
        %2331 = vmatpush1.msra.mxu0 0.0
        %2332 = vmatprep.subr.mxu0 0.0
        %2333 = vmatpush1.msra.mxu0 0.0
        %2334 = vmatprep.subr.mxu0 0.0
        %2335 = vmatpush1.msra.mxu0 0.0
        %2336 = vmatprep.subr.mxu0 0.0
        %2337 = vmatpush1.msra.mxu0 0.0
        %2338 = vmatprep.subr.mxu0 0.0
        %2339 = vmatpush1.msra.mxu0 0.0
        %2340 = vmatprep.subr.mxu0 0.0
        %2341 = vmatpush1.msra.mxu0 0.0
        %2342 = vmatprep.subr.mxu0 0.0
        %2343 = vmatpush1.msra.mxu0 0.0
        %2344 = vmatprep.subr.mxu0 0.0
        %2345 = vmatpush1.msra.mxu0 0.0
        %2346 = vmatprep.subr.mxu0 0.0
        %2347 = vmatpush1.msra.mxu0 0.0
        %2348 = vmatprep.mubr.f32.mxu0 0.0
        %2349 = vmatmul.mubr.f32.gmra.mrb[0].mxu0 %v2017
        %v2350 = vpop.f32.mrb[0].mxu0
        %v2351 = vadd.f32 0.0, %v2350
        %v2352 = vpop.f32.mrb[0].mxu0
        %v2353 = vadd.f32 0.0, %v2352
        %2354 = vdwg.mxu0
        %v2355 = vmul.f32 %v2086, 0.01
        %v2356 = vmul.f32 %v2088, 0.01
        %v2357 = vmul.f32 %v2157, 0.01
        %v2358 = vmul.f32 %v2159, 0.01
        %v2359 = vmul.f32 %v2355, 100.0
        %v2360 = vmul.f32 %v2356, 100.0
        %v2361 = vmul.f32 %v2357, 100.0
        %v2362 = vmul.f32 %v2358, 100.0
        %v2363 = vmul.f32 %v2359, %v2355
        %v2364 = vmul.f32 %v2360, %v2356
        %v2365 = vmul.f32 %v2361, %v2357
        %v2366 = vmul.f32 %v2362, %v2358
        %v2367 = vsub.f32 %v2280, %v2363
        %v2368 = vsub.f32 %v2282, %v2364
        %v2369 = vsub.f32 %v2351, %v2365
        %v2370 = vsub.f32 %v2353, %v2366
        %v2371 = vmax.f32 %v2367, 0.0
        %v2372 = vmax.f32 %v2368, 0.0
        %v2373 = vmax.f32 %v2369, 0.0
        %v2374 = vmax.f32 %v2370, 0.0
        %v2375 = vrcp.pop 99.0
        %v2376 = vmul.f32 %v2371, %v2375
        %v2377 = vmul.f32 %v2372, %v2375
        %v2378 = vmul.f32 %v2373, %v2375
        %v2379 = vmul.f32 %v2374, %v2375
        %v2380 = vmul.f32 %v1956, %v1324
        %v2381 = vmul.f32 %v1958, %v1326
        %v2382 = vmul.f32 %v1960, %v1328
        %v2383 = vmul.f32 %v1962, %v1330
        %v2384 = vrsqrt.pop %v2376
        %v2385 = vmul.f32 %v2376, %v2384
        %vm2386 = vcmp.eq.f32.partialorder %v2376, inf
        %v2387 = vsel %vm2386, %v2376, %v2385
        %vm2388 = vcmp.eq.f32.partialorder %v2376, 0.0
        %v2389 = vand.u32 %v2376, 2147483648
        %v2390 = vsel %vm2388, %v2389, %v2387
        %v2391 = vrsqrt.pop %v2377
        %v2392 = vmul.f32 %v2377, %v2391
        %vm2393 = vcmp.eq.f32.partialorder %v2377, inf
        %v2394 = vsel %vm2393, %v2377, %v2392
        %vm2395 = vcmp.eq.f32.partialorder %v2377, 0.0
        %v2396 = vand.u32 %v2377, 2147483648
        %v2397 = vsel %vm2395, %v2396, %v2394
        %v2398 = vrsqrt.pop %v2378
        %v2399 = vmul.f32 %v2378, %v2398
        %vm2400 = vcmp.eq.f32.partialorder %v2378, inf
        %v2401 = vsel %vm2400, %v2378, %v2399
        %vm2402 = vcmp.eq.f32.partialorder %v2378, 0.0
        %v2403 = vand.u32 %v2378, 2147483648
        %v2404 = vsel %vm2402, %v2403, %v2401
        %v2405 = vrsqrt.pop %v2379
        %v2406 = vmul.f32 %v2379, %v2405
        %vm2407 = vcmp.eq.f32.partialorder %v2379, inf
        %v2408 = vsel %vm2407, %v2379, %v2406
        %vm2409 = vcmp.eq.f32.partialorder %v2379, 0.0
        %v2410 = vand.u32 %v2379, 2147483648
        %v2411 = vsel %vm2409, %v2410, %v2408
        %v2412 = vmul.f32 %v2380, %v2390
        %v2413 = vmul.f32 %v2381, %v2397
        %v2414 = vmul.f32 %v2382, %v2404
        %v2415 = vmul.f32 %v2383, %v2411
        %v2416 = vadd.f32 %v2412, %v1929
        %v2417 = vadd.f32 %v2413, %v1936
        %v2418 = vadd.f32 %v2414, %v1943
        %v2419 = vadd.f32 %v2415, %v1950
        %v2424 = vrot.slane %v2412, 6
        %v2425 = vrot.slane %v2413, 6
        %v2426 = vrot.slane %v2414, 6
        %v2427 = vrot.slane %v2415, 6
        %v2436 = vrot.slane %v2416, 5
        %v2437 = vrot.slane %v2417, 5
        %v2438 = vrot.slane %v2418, 5
        %v2439 = vrot.slane %v2419, 5
        %vm2444 = vcmask 1040384
        %v2445 = vsel %vm2444, %v1878, %v1929
        %v2446 = vsel %vm2444, %v1879, %v1936
        %v2447 = vsel %vm2444, %v1880, %v1943
        %v2448 = vsel %vm2444, %v1881, %v1950
        %vm2449 = vcmask 1041408
        %v2450 = vsel %vm2449, %v2445, %v2424
        %v2451 = vsel %vm2449, %v2446, %v2425
        %v2452 = vsel %vm2449, %v2447, %v2426
        %v2453 = vsel %vm2449, %v2448, %v2427
        %v2454 = vsel %vm1294, %v2450, %v2436
        %v2455 = vsel %vm1294, %v2451, %v2437
        %v2456 = vsel %vm1294, %v2452, %v2438
        %v2457 = vsel %vm1294, %v2453, %v2439
        %v2462 = vcombine.low %v2454, %v2455
        %v2463 = vcombine.low %v2456, %v2457
        %2466 = vst [vmem:[%s510] sm:$0xff] %v2462
        %2467 = vst [vmem:[%s510 + $0x8] sm:$0xff] %v2463
        %s2468 = smul.u32 4, %s20
        %p2469 = scmp.lt.s32.totalorder %s2468, 7
        %s2470 = scalar_select %p2469, %s2468, 7
        %s2471 = smul.addr %s2470, 4
        %s2472 = scalar_lea.vmem %s9, %s2471
        // Predicated region
        $region103: #{iseflow_forward.1} parent=93 // pred_check
          %p2473 = pneg %p237
        $region104: #{iseflow_forward.1} parent=93 // pred_check_branch
          %2475 = sbr.rel (%p2473) target = $region106
        $region105: #{iseflow_forward.1} parent=93 // pred_region
          %s2476 = smul.u32 4, %s20
        $region106: #{iseflow_forward.1} parent=93 // pred_fallthru
          _
      $region94: #{iseflow_forward.1} parent=5 // pred_fallthru
        _
      %p2477 = scmp.le.s32.totalorder 2, %s15
      // Predicated region
      $region107: #{iseflow_forward.1} parent=5 // pred_check
        %p2478 = pneg %p2477
      $region108: #{iseflow_forward.1} parent=5 // pred_check_branch
        %2480 = sbr.rel (%p2478) target = $region110
      $region109: #{iseflow_forward.1} parent=5 // pred_region
        %s2481 = ssub.s32 %s15, 2
        // Predicated region
        $region111: #{iseflow_forward.1} parent=109 // pred_check
          %p2482 = pneg %p243
        $region112: #{iseflow_forward.1} parent=109 // pred_check_branch
          %2484 = sbr.rel (%p2482) target = $region114
        $region113: #{iseflow_forward.1} parent=109 // pred_region
          %s2485 = smul.u32 4, %s21
          %p2486 = scmp.lt.s32.totalorder %s2485, 7
          %s2487 = scalar_select %p2486, %s2485, 7
          %s2488 = smul.addr %s2487, 4
          %s2489 = scalar_lea.vmem %s9, %s2488
        $region114: #{iseflow_forward.1} parent=109 // pred_fallthru
          _
      $region110: #{iseflow_forward.1} parent=5 // pred_fallthru
        _
    $region6: #{iseflow_forward.1} parent=1 // loop_footer
      %s19 = sadd.s32 1, %s15
    $region7: #{iseflow_forward.1} parent=1 // loop_footer_branch
      %14 = sbr.rel target = $region3
    $region8: #{iseflow_forward.1} parent=1 // loop_exit
      _

</llo_original>
